<compile_context>
chip_gen: v7x
topology: tpu7x:2x2x1
jax: 0.10.0
libtpu: 0.0.40
codegen_flags: <defaults>
</compile_context>

<pallas_src>
import jax
import jax.numpy as jnp
from jax import lax
from jax.experimental import pallas as pl
from jax.experimental.pallas import tpu as pltpu

# --- small, module-consistent sizes (n_embd in the original is 384; we use a
#     small deterministic configuration for this synthetic kernel) ---
B = 2            # batch
T = 16           # sequence length (<= block_size, causal mask applied)
N_EMBD = 128     # embedding dim
N_HEAD = 4
HEAD_SIZE = N_EMBD // N_HEAD
HIDDEN = 4 * N_EMBD
EPS = 1e-5       # nn.LayerNorm default eps
SCALE = float(N_EMBD) ** -0.5   # reference uses C**-0.5 where C = n_embd
NEG_MASK = -1e30                # finite "masked" fill (== -inf behavior here)


def _layernorm_f32(x, gamma, beta):
    # Single-pass LN: mean and E[x^2] are independent reductions.
    mean = jnp.mean(x, axis=-1, keepdims=True)
    mean_sq = jnp.mean(x * x, axis=-1, keepdims=True)
    var = jnp.maximum(mean_sq - mean * mean, 0.0)
    return (x - mean) * lax.rsqrt(var + EPS) * gamma + beta


def block_kernel(x_ref,
                 ln1_g_ref, ln1_b_ref,
                 wqkv_ref, wproj_ref, bproj_ref,
                 ln2_g_ref, ln2_b_ref,
                 w1_ref, b1_ref, w2_ref, b2_ref,
                 o_ref):
    BT = B * T
    C = N_EMBD
    D = HEAD_SIZE
    x = x_ref[...].reshape(BT, C)                             # (BT, C) f32

    # ---- ln1 (f32) + fused-QKV multi-head causal attention (bf16 MXU) ----
    ln1 = _layernorm_f32(x, ln1_g_ref[0], ln1_b_ref[0]).astype(jnp.bfloat16)

    qkv = jnp.dot(ln1, wqkv_ref[...],
                  preferred_element_type=jnp.float32)         # (BT, 3C) f32

    # Scale applied once to Q (reference: wei = q @ k^T * C**-0.5).
    q = (qkv[:, 0:C] * SCALE).reshape(B, T, C).astype(jnp.bfloat16)
    k = qkv[:, C:2 * C].reshape(B, T, C).astype(jnp.bfloat16)
    v = qkv[:, 2 * C:3 * C].reshape(B, T, C).astype(jnp.bfloat16)

    # Heads moved from lane sub-blocks to the leading (batch) axis, head-major:
    # (B, T, C) -> (H*B, T, D).  Single relayout instead of per-head work.
    def split_heads(a):
        return jnp.concatenate(
            [a[:, :, h * D:(h + 1) * D] for h in range(N_HEAD)], axis=0)

    qh = split_heads(q)                                       # (HB, T, D) bf16
    kh = split_heads(k)
    vh = split_heads(v)

    row = lax.broadcasted_iota(jnp.int32, (T, T), 0)
    col = lax.broadcasted_iota(jnp.int32, (T, T), 1)
    causal = row >= col                                       # (T, T) bool

    # One batched score einsum over all B*H heads (K-transpose folded in).
    wei = jnp.einsum("ztd,zsd->zts", qh, kh,
                     preferred_element_type=jnp.float32)      # (HB, T, T) f32
    wei = jnp.where(causal, wei, NEG_MASK)

    # One softmax chain for all heads; divide rides the EUP (approx recip).
    m = jnp.max(wei, axis=-1, keepdims=True)
    p = jnp.exp(wei - m)
    denom = jnp.sum(p, axis=-1, keepdims=True)
    p = p * pl.reciprocal(denom, approx=True)

    oh = jnp.einsum("zts,zsd->ztd", p.astype(jnp.bfloat16), vh,
                    preferred_element_type=jnp.float32)       # (HB, T, D) f32

    # Heads back onto the lane axis (inherent relayout before the projection).
    sa = jnp.concatenate([oh[h * B:(h + 1) * B] for h in range(N_HEAD)],
                         axis=-1)                             # (B, T, C) f32
    sa = sa.reshape(BT, C).astype(jnp.bfloat16)
    sa = jnp.dot(sa, wproj_ref[...],
                 preferred_element_type=jnp.float32) + bproj_ref[0]

    x1 = x + sa                                               # residual (f32)

    # ---- ln2 (f32) + feed-forward (bf16 MXU, f32 acc) ----
    ln2 = _layernorm_f32(x1, ln2_g_ref[0], ln2_b_ref[0]).astype(jnp.bfloat16)
    h1 = jnp.dot(ln2, w1_ref[...], preferred_element_type=jnp.float32) + b1_ref[0]
    h1 = jnp.maximum(h1, 0.0).astype(jnp.bfloat16)            # ReLU f32, cast
    ff = jnp.dot(h1, w2_ref[...], preferred_element_type=jnp.float32) + b2_ref[0]

    o_ref[...] = (x1 + ff).reshape(B, T, C)


def _block_fwd(x, kp):
    """x: (B, T, N_EMBD) f32; kp: kernel-ready params (see prepare_params)."""
    args = (
        x,
        kp["ln1_g"], kp["ln1_b"],
        kp["wqkv"], kp["wproj"], kp["bproj"],
        kp["ln2_g"], kp["ln2_b"],
        kp["w1"], kp["b1"], kp["w2"], kp["b2"],
    )
    in_specs = [pl.BlockSpec(memory_space=pltpu.MemorySpace.VMEM)
                for _ in args]
    out_specs = pl.BlockSpec(memory_space=pltpu.MemorySpace.VMEM)

    return pl.pallas_call(
        block_kernel,
        out_shape=jax.ShapeDtypeStruct((B, T, N_EMBD), jnp.float32),
        in_specs=in_specs,
        out_specs=out_specs,
    )(*args)


# jit once: no per-call weight casts, no per-call re-trace/dispatch overhead.
transformer_block = jax.jit(_block_fwd)


def prepare_params(p):
    """One-time prep: fuse QKV and pre-cast matmul weights to bf16.

    LayerNorm params and biases stay f32 (added to f32 accumulators).
    """
    bf16 = jnp.bfloat16
    return {
        "ln1_g": p["ln1_g"], "ln1_b": p["ln1_b"],
        "wqkv": jnp.concatenate([p["wq"], p["wk"], p["wv"]], axis=1).astype(bf16),
        "wproj": p["wproj"].astype(bf16), "bproj": p["bproj"],
        "ln2_g": p["ln2_g"], "ln2_b": p["ln2_b"],
        "w1": p["w1"].astype(bf16), "b1": p["b1"],
        "w2": p["w2"].astype(bf16), "b2": p["b2"],
    }


def init_params(key):
    """Deterministic init mimicking PyTorch default Linear init scale (f32)."""
    C = N_EMBD
    H = HIDDEN
    ks = jax.random.split(key, 10)

    def lin_w(k, fan_in, fan_out):
        bound = 1.0 / jnp.sqrt(fan_in)
        return jax.random.uniform(k, (fan_in, fan_out), jnp.float32, -bound, bound)

    def lin_b(k, fan_in, fan_out):
        bound = 1.0 / jnp.sqrt(fan_in)
        return jax.random.uniform(k, (1, fan_out), jnp.float32, -bound, bound)

    return {
        "ln1_g": jnp.ones((1, C), jnp.float32),
        "ln1_b": jnp.zeros((1, C), jnp.float32),
        "wk": lin_w(ks[0], C, C),
        "wq": lin_w(ks[1], C, C),
        "wv": lin_w(ks[2], C, C),
        "wproj": lin_w(ks[3], C, C),
        "bproj": lin_b(ks[4], C, C),
        "ln2_g": jnp.ones((1, C), jnp.float32),
        "ln2_b": jnp.zeros((1, C), jnp.float32),
        "w1": lin_w(ks[5], C, H),
        "b1": lin_b(ks[6], C, H),
        "w2": lin_w(ks[7], H, C),
        "b2": lin_b(ks[8], H, C),
    }


def reference_block(x, p, *, matmul_dtype=jnp.float32):
    """Pure-JAX reference matching the PyTorch forward (dropout = identity).

    matmul_dtype=bfloat16 reproduces the kernel's MXU input precision
    (with f32 accumulation); float32 is the exact original-module math.
    """
    md = matmul_dtype

    def mm(a, b):
        return jnp.dot(a.astype(md), b.astype(md),
                       preferred_element_type=jnp.float32)

    def ln(v, g, b):
        m = jnp.mean(v, axis=-1, keepdims=True)
        var = jnp.mean((v - m) ** 2, axis=-1, keepdims=True)
        return (v - m) * lax.rsqrt(var + EPS) * g[0] + b[0]

    ln1 = ln(x, p["ln1_g"], p["ln1_b"])
    Q = mm(ln1, p["wq"]) * SCALE
    K = mm(ln1, p["wk"])
    V = mm(ln1, p["wv"])
    mask = jnp.tril(jnp.ones((T, T), bool))
    outs = []
    for h in range(N_HEAD):
        lo = h * HEAD_SIZE
        q = Q[..., lo:lo + HEAD_SIZE].astype(md)
        k = K[..., lo:lo + HEAD_SIZE].astype(md)
        v = V[..., lo:lo + HEAD_SIZE].astype(md)
        wei = jnp.einsum("btd,bsd->bts", q, k,
                         preferred_element_type=jnp.float32)
        wei = jnp.where(mask, wei, -jnp.inf)
        wei = jax.nn.softmax(wei, axis=-1)
        outs.append(jnp.einsum("bts,bsd->btd", wei.astype(md), v,
                               preferred_element_type=jnp.float32))
    sa = jnp.concatenate(outs, axis=-1)
    sa = mm(sa, p["wproj"]) + p["bproj"][0]
    x1 = x + sa
    ln2 = ln(x1, p["ln2_g"], p["ln2_b"])
    h1 = jnp.maximum(mm(ln2, p["w1"]) + p["b1"][0], 0.0)
    ff = mm(h1, p["w2"]) + p["b2"][0]
    return x1 + ff


if __name__ == "__main__":
    key = jax.random.PRNGKey(0)
    k_x, k_p = jax.random.split(key)
    x = jax.random.normal(k_x, (B, T, N_EMBD), jnp.float32)
    params = init_params(k_p)
    kparams = jax.tree_util.tree_map(jax.block_until_ready,
                                     prepare_params(params))

    out = jax.block_until_ready(transformer_block(x, kparams))
    assert out.shape == (B, T, N_EMBD)
    assert bool(jnp.all(jnp.isfinite(out)))

    # Reference with the same bf16 MXU input precision as the kernel.
    ref_bf16 = reference_block(x, params, matmul_dtype=jnp.bfloat16)
    assert jnp.allclose(out, ref_bf16, atol=1e-2, rtol=1e-2), (
        "mismatch vs bf16-matmul reference, max abs err = "
        f"{float(jnp.max(jnp.abs(out - ref_bf16)))}")

    # Full-f32 reference of the original module (loose tol accounts for the
    # intentional bf16 MXU rounding in the optimized kernel).
    ref_f32 = reference_block(x, params, matmul_dtype=jnp.float32)
    assert jnp.allclose(out, ref_f32, atol=5e-2, rtol=5e-2), (
        "mismatch vs f32 reference, max abs err = "
        f"{float(jnp.max(jnp.abs(out - ref_f32)))}")

    print("KERNEL_OK")
</pallas_src>

<mosaic_0001>
module attributes {stable_mosaic.version = 11 : i64} {
  func.func @block_kernel(%arg0: memref<2x16x128xf32, #tpu.memory_space<vmem>>, %arg1: memref<1x128xf32, #tpu.memory_space<vmem>>, %arg2: memref<1x128xf32, #tpu.memory_space<vmem>>, %arg3: memref<128x384xbf16, #tpu.memory_space<vmem>>, %arg4: memref<128x128xbf16, #tpu.memory_space<vmem>>, %arg5: memref<1x128xf32, #tpu.memory_space<vmem>>, %arg6: memref<1x128xf32, #tpu.memory_space<vmem>>, %arg7: memref<1x128xf32, #tpu.memory_space<vmem>>, %arg8: memref<128x512xbf16, #tpu.memory_space<vmem>>, %arg9: memref<1x512xf32, #tpu.memory_space<vmem>>, %arg10: memref<512x128xbf16, #tpu.memory_space<vmem>>, %arg11: memref<1x128xf32, #tpu.memory_space<vmem>>, %arg12: memref<2x16x128xf32, #tpu.memory_space<vmem>>) attributes {dimension_semantics = [], scalar_prefetch = 0 : i64, scratch_operands = 0 : i64, tpu.core_type = #tpu.core_type<tc>} {
    %c0 = arith.constant 0 : index
    %c0_0 = arith.constant 0 : index
    %c0_1 = arith.constant 0 : index
    %0 = vector.load %arg0[%c0, %c0_0, %c0_1] : memref<2x16x128xf32, #tpu.memory_space<vmem>>, vector<2x16x128xf32>
    %1 = vector.shape_cast %0 : vector<2x16x128xf32> to vector<32x128xf32>
    %c0_2 = arith.constant 0 : index
    %c0_3 = arith.constant 0 : index
    %2 = vector.load %arg1[%c0_2, %c0_3] : memref<1x128xf32, #tpu.memory_space<vmem>>, vector<1x128xf32>
    %3 = vector.shape_cast %2 : vector<1x128xf32> to vector<128xf32>
    %c0_4 = arith.constant 0 : index
    %c0_5 = arith.constant 0 : index
    %4 = vector.load %arg2[%c0_4, %c0_5] : memref<1x128xf32, #tpu.memory_space<vmem>>, vector<1x128xf32>
    %5 = vector.shape_cast %4 : vector<1x128xf32> to vector<128xf32>
    %cst = arith.constant dense<0.000000e+00> : vector<32xf32>
    %6 = vector.multi_reduction <add>, %1, %cst [1] : vector<32x128xf32> to vector<32xf32>
    %7 = vector.shape_cast %6 : vector<32xf32> to vector<32x1xf32>
    %cst_6 = arith.constant 1.280000e+02 : f32
    %8 = vector.broadcast %cst_6 : f32 to vector<32x1xf32>
    %9 = arith.divf %7, %8 : vector<32x1xf32>
    %10 = arith.mulf %1, %1 : vector<32x128xf32>
    %cst_7 = arith.constant dense<0.000000e+00> : vector<32xf32>
    %11 = vector.multi_reduction <add>, %10, %cst_7 [1] : vector<32x128xf32> to vector<32xf32>
    %12 = vector.shape_cast %11 : vector<32xf32> to vector<32x1xf32>
    %cst_8 = arith.constant 1.280000e+02 : f32
    %13 = vector.broadcast %cst_8 : f32 to vector<32x1xf32>
    %14 = arith.divf %12, %13 : vector<32x1xf32>
    %15 = arith.mulf %9, %9 : vector<32x1xf32>
    %16 = arith.subf %14, %15 : vector<32x1xf32>
    %cst_9 = arith.constant 0.000000e+00 : f32
    %17 = vector.broadcast %cst_9 : f32 to vector<32x1xf32>
    %18 = arith.maximumf %16, %17 : vector<32x1xf32>
    %19 = vector.broadcast %9 : vector<32x1xf32> to vector<32x128xf32>
    %20 = arith.subf %1, %19 : vector<32x128xf32>
    %cst_10 = arith.constant 9.99999974E-6 : f32
    %21 = vector.broadcast %cst_10 : f32 to vector<32x1xf32>
    %22 = arith.addf %18, %21 : vector<32x1xf32>
    %23 = math.rsqrt %22 : vector<32x1xf32>
    %24 = vector.broadcast %23 : vector<32x1xf32> to vector<32x128xf32>
    %25 = arith.mulf %20, %24 : vector<32x128xf32>
    %26 = vector.shape_cast %3 : vector<128xf32> to vector<1x128xf32>
    %27 = vector.broadcast %26 : vector<1x128xf32> to vector<32x128xf32>
    %28 = arith.mulf %25, %27 : vector<32x128xf32>
    %29 = vector.shape_cast %5 : vector<128xf32> to vector<1x128xf32>
    %30 = vector.broadcast %29 : vector<1x128xf32> to vector<32x128xf32>
    %31 = arith.addf %28, %30 : vector<32x128xf32>
    %32 = arith.truncf %31 : vector<32x128xf32> to vector<32x128xbf16>
    %c0_11 = arith.constant 0 : index
    %c0_12 = arith.constant 0 : index
    %33 = vector.load %arg3[%c0_11, %c0_12] : memref<128x384xbf16, #tpu.memory_space<vmem>>, vector<128x384xbf16>
    %cst_13 = arith.constant dense<0.000000e+00> : vector<32x384xf32>
    %34 = tpu.matmul %32, %33, %cst_13 {dimension_numbers = #tpu.dot_dimension_numbers<[1], [0], [0], [1], [0, 0, 1, 1], [], []>} : vector<32x128xbf16>, vector<128x384xbf16>, vector<32x384xf32> -> vector<32x384xf32>
    %35 = vector.extract_strided_slice %34 {offsets = [0, 0], sizes = [32, 128], strides = [1, 1]} : vector<32x384xf32> to vector<32x128xf32>
    %cst_14 = arith.constant 0.0883883461 : f32
    %36 = vector.broadcast %cst_14 : f32 to vector<32x128xf32>
    %37 = arith.mulf %35, %36 : vector<32x128xf32>
    %38 = vector.shape_cast %37 : vector<32x128xf32> to vector<2x16x128xf32>
    %39 = arith.truncf %38 : vector<2x16x128xf32> to vector<2x16x128xbf16>
    %40 = vector.extract_strided_slice %34 {offsets = [0, 128], sizes = [32, 128], strides = [1, 1]} : vector<32x384xf32> to vector<32x128xf32>
    %41 = vector.shape_cast %40 : vector<32x128xf32> to vector<2x16x128xf32>
    %42 = arith.truncf %41 : vector<2x16x128xf32> to vector<2x16x128xbf16>
    %43 = vector.extract_strided_slice %34 {offsets = [0, 256], sizes = [32, 128], strides = [1, 1]} : vector<32x384xf32> to vector<32x128xf32>
    %44 = vector.shape_cast %43 : vector<32x128xf32> to vector<2x16x128xf32>
    %45 = arith.truncf %44 : vector<2x16x128xf32> to vector<2x16x128xbf16>
    %46 = vector.extract_strided_slice %39 {offsets = [0, 0, 0], sizes = [2, 16, 32], strides = [1, 1, 1]} : vector<2x16x128xbf16> to vector<2x16x32xbf16>
    %47 = vector.extract_strided_slice %39 {offsets = [0, 0, 32], sizes = [2, 16, 32], strides = [1, 1, 1]} : vector<2x16x128xbf16> to vector<2x16x32xbf16>
    %48 = vector.extract_strided_slice %39 {offsets = [0, 0, 64], sizes = [2, 16, 32], strides = [1, 1, 1]} : vector<2x16x128xbf16> to vector<2x16x32xbf16>
    %49 = vector.extract_strided_slice %39 {offsets = [0, 0, 96], sizes = [2, 16, 32], strides = [1, 1, 1]} : vector<2x16x128xbf16> to vector<2x16x32xbf16>
    %50 = tpu.concatenate %46, %47, %48, %49 in 0 : vector<2x16x32xbf16>, vector<2x16x32xbf16>, vector<2x16x32xbf16>, vector<2x16x32xbf16> -> vector<8x16x32xbf16>
    %51 = vector.extract_strided_slice %42 {offsets = [0, 0, 0], sizes = [2, 16, 32], strides = [1, 1, 1]} : vector<2x16x128xbf16> to vector<2x16x32xbf16>
    %52 = vector.extract_strided_slice %42 {offsets = [0, 0, 32], sizes = [2, 16, 32], strides = [1, 1, 1]} : vector<2x16x128xbf16> to vector<2x16x32xbf16>
    %53 = vector.extract_strided_slice %42 {offsets = [0, 0, 64], sizes = [2, 16, 32], strides = [1, 1, 1]} : vector<2x16x128xbf16> to vector<2x16x32xbf16>
    %54 = vector.extract_strided_slice %42 {offsets = [0, 0, 96], sizes = [2, 16, 32], strides = [1, 1, 1]} : vector<2x16x128xbf16> to vector<2x16x32xbf16>
    %55 = tpu.concatenate %51, %52, %53, %54 in 0 : vector<2x16x32xbf16>, vector<2x16x32xbf16>, vector<2x16x32xbf16>, vector<2x16x32xbf16> -> vector<8x16x32xbf16>
    %56 = vector.extract_strided_slice %45 {offsets = [0, 0, 0], sizes = [2, 16, 32], strides = [1, 1, 1]} : vector<2x16x128xbf16> to vector<2x16x32xbf16>
    %57 = vector.extract_strided_slice %45 {offsets = [0, 0, 32], sizes = [2, 16, 32], strides = [1, 1, 1]} : vector<2x16x128xbf16> to vector<2x16x32xbf16>
    %58 = vector.extract_strided_slice %45 {offsets = [0, 0, 64], sizes = [2, 16, 32], strides = [1, 1, 1]} : vector<2x16x128xbf16> to vector<2x16x32xbf16>
    %59 = vector.extract_strided_slice %45 {offsets = [0, 0, 96], sizes = [2, 16, 32], strides = [1, 1, 1]} : vector<2x16x128xbf16> to vector<2x16x32xbf16>
    %60 = tpu.concatenate %56, %57, %58, %59 in 0 : vector<2x16x32xbf16>, vector<2x16x32xbf16>, vector<2x16x32xbf16>, vector<2x16x32xbf16> -> vector<8x16x32xbf16>
    %61 = tpu.iota {dimensions = array<i32: 0>} : vector<16x16xi32>
    %62 = tpu.iota {dimensions = array<i32: 1>} : vector<16x16xi32>
    %63 = arith.cmpi sge, %61, %62 : vector<16x16xi32>
    "tpu.trace_start"() <{level = 10 : i32, message = "ztd,zsd->zts"}> : () -> ()
    %cst_15 = arith.constant dense<0.000000e+00> : vector<8x16x16xf32>
    %64 = tpu.matmul %50, %55, %cst_15 {dimension_numbers = #tpu.dot_dimension_numbers<[2], [2], [1], [1], [0, 0, 0, 1, 1, 1], [0], [0]>} : vector<8x16x32xbf16>, vector<8x16x32xbf16>, vector<8x16x16xf32> -> vector<8x16x16xf32>
    %cst_16 = arith.constant -1.000000e+30 : f32
    "tpu.trace_stop"() : () -> ()
    %65 = vector.shape_cast %63 : vector<16x16xi1> to vector<1x16x16xi1>
    %66 = vector.broadcast %65 : vector<1x16x16xi1> to vector<8x16x16xi1>
    %67 = vector.broadcast %cst_16 : f32 to vector<8x16x16xf32>
    %68 = arith.select %66, %64, %67 : vector<8x16x16xi1>, vector<8x16x16xf32>
    %cst_17 = arith.constant dense<0xFF800000> : vector<8x16xf32>
    %69 = vector.multi_reduction <maximumf>, %68, %cst_17 [2] : vector<8x16x16xf32> to vector<8x16xf32>
    %70 = vector.shape_cast %69 : vector<8x16xf32> to vector<8x16x1xf32>
    %71 = vector.broadcast %70 : vector<8x16x1xf32> to vector<8x16x16xf32>
    %72 = arith.subf %68, %71 : vector<8x16x16xf32>
    %73 = math.exp %72 : vector<8x16x16xf32>
    %cst_18 = arith.constant dense<0.000000e+00> : vector<8x16xf32>
    %74 = vector.multi_reduction <add>, %73, %cst_18 [2] : vector<8x16x16xf32> to vector<8x16xf32>
    %75 = vector.shape_cast %74 : vector<8x16xf32> to vector<8x16x1xf32>
    %76 = tpu.reciprocal %75 {approx = true} : vector<8x16x1xf32> -> vector<8x16x1xf32>
    %77 = vector.broadcast %76 : vector<8x16x1xf32> to vector<8x16x16xf32>
    %78 = arith.mulf %73, %77 : vector<8x16x16xf32>
    %79 = arith.truncf %78 : vector<8x16x16xf32> to vector<8x16x16xbf16>
    "tpu.trace_start"() <{level = 10 : i32, message = "zts,zsd->ztd"}> : () -> ()
    %cst_19 = arith.constant dense<0.000000e+00> : vector<8x16x32xf32>
    %80 = tpu.matmul %79, %60, %cst_19 {dimension_numbers = #tpu.dot_dimension_numbers<[2], [1], [1], [2], [0, 0, 0, 1, 1, 2], [0], [0]>} : vector<8x16x16xbf16>, vector<8x16x32xbf16>, vector<8x16x32xf32> -> vector<8x16x32xf32>
    "tpu.trace_stop"() : () -> ()
    %81 = vector.extract_strided_slice %80 {offsets = [0, 0, 0], sizes = [2, 16, 32], strides = [1, 1, 1]} : vector<8x16x32xf32> to vector<2x16x32xf32>
    %82 = vector.extract_strided_slice %80 {offsets = [2, 0, 0], sizes = [2, 16, 32], strides = [1, 1, 1]} : vector<8x16x32xf32> to vector<2x16x32xf32>
    %83 = vector.extract_strided_slice %80 {offsets = [4, 0, 0], sizes = [2, 16, 32], strides = [1, 1, 1]} : vector<8x16x32xf32> to vector<2x16x32xf32>
    %84 = vector.extract_strided_slice %80 {offsets = [6, 0, 0], sizes = [2, 16, 32], strides = [1, 1, 1]} : vector<8x16x32xf32> to vector<2x16x32xf32>
    %85 = tpu.concatenate %81, %82, %83, %84 in 2 : vector<2x16x32xf32>, vector<2x16x32xf32>, vector<2x16x32xf32>, vector<2x16x32xf32> -> vector<2x16x128xf32>
    %86 = vector.shape_cast %85 : vector<2x16x128xf32> to vector<32x128xf32>
    %87 = arith.truncf %86 : vector<32x128xf32> to vector<32x128xbf16>
    %c0_20 = arith.constant 0 : index
    %c0_21 = arith.constant 0 : index
    %88 = vector.load %arg4[%c0_20, %c0_21] : memref<128x128xbf16, #tpu.memory_space<vmem>>, vector<128x128xbf16>
    %cst_22 = arith.constant dense<0.000000e+00> : vector<32x128xf32>
    %89 = tpu.matmul %87, %88, %cst_22 {dimension_numbers = #tpu.dot_dimension_numbers<[1], [0], [0], [1], [0, 0, 1, 1], [], []>} : vector<32x128xbf16>, vector<128x128xbf16>, vector<32x128xf32> -> vector<32x128xf32>
    %c0_23 = arith.constant 0 : index
    %c0_24 = arith.constant 0 : index
    %90 = vector.load %arg5[%c0_23, %c0_24] : memref<1x128xf32, #tpu.memory_space<vmem>>, vector<1x128xf32>
    %91 = vector.shape_cast %90 : vector<1x128xf32> to vector<128xf32>
    %92 = vector.shape_cast %91 : vector<128xf32> to vector<1x128xf32>
    %93 = vector.broadcast %92 : vector<1x128xf32> to vector<32x128xf32>
    %94 = arith.addf %89, %93 : vector<32x128xf32>
    %95 = arith.addf %1, %94 : vector<32x128xf32>
    %c0_25 = arith.constant 0 : index
    %c0_26 = arith.constant 0 : index
    %96 = vector.load %arg6[%c0_25, %c0_26] : memref<1x128xf32, #tpu.memory_space<vmem>>, vector<1x128xf32>
    %97 = vector.shape_cast %96 : vector<1x128xf32> to vector<128xf32>
    %c0_27 = arith.constant 0 : index
    %c0_28 = arith.constant 0 : index
    %98 = vector.load %arg7[%c0_27, %c0_28] : memref<1x128xf32, #tpu.memory_space<vmem>>, vector<1x128xf32>
    %99 = vector.shape_cast %98 : vector<1x128xf32> to vector<128xf32>
    %cst_29 = arith.constant dense<0.000000e+00> : vector<32xf32>
    %100 = vector.multi_reduction <add>, %95, %cst_29 [1] : vector<32x128xf32> to vector<32xf32>
    %101 = vector.shape_cast %100 : vector<32xf32> to vector<32x1xf32>
    %cst_30 = arith.constant 1.280000e+02 : f32
    %102 = vector.broadcast %cst_30 : f32 to vector<32x1xf32>
    %103 = arith.divf %101, %102 : vector<32x1xf32>
    %104 = arith.mulf %95, %95 : vector<32x128xf32>
    %cst_31 = arith.constant dense<0.000000e+00> : vector<32xf32>
    %105 = vector.multi_reduction <add>, %104, %cst_31 [1] : vector<32x128xf32> to vector<32xf32>
    %106 = vector.shape_cast %105 : vector<32xf32> to vector<32x1xf32>
    %cst_32 = arith.constant 1.280000e+02 : f32
    %107 = vector.broadcast %cst_32 : f32 to vector<32x1xf32>
    %108 = arith.divf %106, %107 : vector<32x1xf32>
    %109 = arith.mulf %103, %103 : vector<32x1xf32>
    %110 = arith.subf %108, %109 : vector<32x1xf32>
    %cst_33 = arith.constant 0.000000e+00 : f32
    %111 = vector.broadcast %cst_33 : f32 to vector<32x1xf32>
    %112 = arith.maximumf %110, %111 : vector<32x1xf32>
    %113 = vector.broadcast %103 : vector<32x1xf32> to vector<32x128xf32>
    %114 = arith.subf %95, %113 : vector<32x128xf32>
    %cst_34 = arith.constant 9.99999974E-6 : f32
    %115 = vector.broadcast %cst_34 : f32 to vector<32x1xf32>
    %116 = arith.addf %112, %115 : vector<32x1xf32>
    %117 = math.rsqrt %116 : vector<32x1xf32>
    %118 = vector.broadcast %117 : vector<32x1xf32> to vector<32x128xf32>
    %119 = arith.mulf %114, %118 : vector<32x128xf32>
    %120 = vector.shape_cast %97 : vector<128xf32> to vector<1x128xf32>
    %121 = vector.broadcast %120 : vector<1x128xf32> to vector<32x128xf32>
    %122 = arith.mulf %119, %121 : vector<32x128xf32>
    %123 = vector.shape_cast %99 : vector<128xf32> to vector<1x128xf32>
    %124 = vector.broadcast %123 : vector<1x128xf32> to vector<32x128xf32>
    %125 = arith.addf %122, %124 : vector<32x128xf32>
    %126 = arith.truncf %125 : vector<32x128xf32> to vector<32x128xbf16>
    %c0_35 = arith.constant 0 : index
    %c0_36 = arith.constant 0 : index
    %127 = vector.load %arg8[%c0_35, %c0_36] : memref<128x512xbf16, #tpu.memory_space<vmem>>, vector<128x512xbf16>
    %cst_37 = arith.constant dense<0.000000e+00> : vector<32x512xf32>
    %128 = tpu.matmul %126, %127, %cst_37 {dimension_numbers = #tpu.dot_dimension_numbers<[1], [0], [0], [1], [0, 0, 1, 1], [], []>} : vector<32x128xbf16>, vector<128x512xbf16>, vector<32x512xf32> -> vector<32x512xf32>
    %c0_38 = arith.constant 0 : index
    %c0_39 = arith.constant 0 : index
    %129 = vector.load %arg9[%c0_38, %c0_39] : memref<1x512xf32, #tpu.memory_space<vmem>>, vector<1x512xf32>
    %130 = vector.shape_cast %129 : vector<1x512xf32> to vector<512xf32>
    %131 = vector.shape_cast %130 : vector<512xf32> to vector<1x512xf32>
    %132 = vector.broadcast %131 : vector<1x512xf32> to vector<32x512xf32>
    %133 = arith.addf %128, %132 : vector<32x512xf32>
    %cst_40 = arith.constant 0.000000e+00 : f32
    %134 = vector.broadcast %cst_40 : f32 to vector<32x512xf32>
    %135 = arith.maximumf %133, %134 : vector<32x512xf32>
    %136 = arith.truncf %135 : vector<32x512xf32> to vector<32x512xbf16>
    %c0_41 = arith.constant 0 : index
    %c0_42 = arith.constant 0 : index
    %137 = vector.load %arg10[%c0_41, %c0_42] : memref<512x128xbf16, #tpu.memory_space<vmem>>, vector<512x128xbf16>
    %cst_43 = arith.constant dense<0.000000e+00> : vector<32x128xf32>
    %138 = tpu.matmul %136, %137, %cst_43 {dimension_numbers = #tpu.dot_dimension_numbers<[1], [0], [0], [1], [0, 0, 1, 1], [], []>} : vector<32x512xbf16>, vector<512x128xbf16>, vector<32x128xf32> -> vector<32x128xf32>
    %c0_44 = arith.constant 0 : index
    %c0_45 = arith.constant 0 : index
    %139 = vector.load %arg11[%c0_44, %c0_45] : memref<1x128xf32, #tpu.memory_space<vmem>>, vector<1x128xf32>
    %140 = vector.shape_cast %139 : vector<1x128xf32> to vector<128xf32>
    %141 = vector.shape_cast %140 : vector<128xf32> to vector<1x128xf32>
    %142 = vector.broadcast %141 : vector<1x128xf32> to vector<32x128xf32>
    %143 = arith.addf %138, %142 : vector<32x128xf32>
    %144 = arith.addf %95, %143 : vector<32x128xf32>
    %145 = vector.shape_cast %144 : vector<32x128xf32> to vector<2x16x128xf32>
    %c0_46 = arith.constant 0 : index
    %c0_47 = arith.constant 0 : index
    %c0_48 = arith.constant 0 : index
    %146 = vector.load %arg12[%c0_46, %c0_47, %c0_48] : memref<2x16x128xf32, #tpu.memory_space<vmem>>, vector<2x16x128xf32>
    tpu.vector_store %arg12[%c0_46, %c0_47, %c0_48], %145 {strides = array<i32>} : memref<2x16x128xf32, #tpu.memory_space<vmem>>, vector<2x16x128xf32>,
    return
  }
}

</mosaic_0001>

<llo_original>
// kernel: _block_fwd.1
$region0: #{_block_fwd.1}
  #allocation0 [shape = 'u32[]', space=smem, size = 0x4, offset = 0x4, fixed_abs, tag = 'smem constant byte address 0x4 - core index']
  #allocation1 [shape = 'u32[144,128]{1,0:T(1,128)}', space=vmem, size = 0x12000, scoped, tag = 'internal scratch']
  %s0 = inlined_call_operand.hbm [shape: f32[2,16,128], index: 0, kind: input, shape index: {}]
  %s1 = inlined_call_operand.vmem [shape: f32[1,128], index: 1, kind: input, shape index: {}]
  %s2 = inlined_call_operand.vmem [shape: f32[1,128], index: 2, kind: input, shape index: {}]
  %s3 = inlined_call_operand.hbm [shape: bf16[128,384], index: 3, kind: input, shape index: {}]
  %s4 = inlined_call_operand.hbm [shape: bf16[128,128], index: 4, kind: input, shape index: {}]
  %s5 = inlined_call_operand.vmem [shape: f32[1,128], index: 5, kind: input, shape index: {}]
  %s6 = inlined_call_operand.vmem [shape: f32[1,128], index: 6, kind: input, shape index: {}]
  %s7 = inlined_call_operand.vmem [shape: f32[1,128], index: 7, kind: input, shape index: {}]
  %s8 = inlined_call_operand.hbm [shape: bf16[128,512], index: 8, kind: input, shape index: {}]
  %s9 = inlined_call_operand.hbm [shape: f32[1,512], index: 9, kind: input, shape index: {}]
  %s10 = inlined_call_operand.hbm [shape: bf16[512,128], index: 10, kind: input, shape index: {}]
  %s11 = inlined_call_operand.vmem [shape: f32[1,128], index: 11, kind: input, shape index: {}]
  %s12 = inlined_call_operand.hbm [shape: f32[2,16,128], index: 12, kind: output, shape index: {}]
  %s13 = sld [smem:[#allocation0]]
  $region82: #{_block_fwd.1} parent=0
    _
  %s15 = ssub.s32 1, %s13
  %s16 = scalar_select 0, %s15, %s13
  $region1: #{_block_fwd.1} parent=0
    #allocation2 [shape = 'u8[16384]{0}', space=vmem, size = 0x4000, scoped, tag = 'input window, operand 0, single buffered']
    #allocation3 [shape = 's32[1]{0}', space=sflag, size = 0x4, scoped, tag = 'scoped memory for _block_fwd.1']
    #allocation4 [shape = 's32[1]{0}', space=sflag, size = 0x4, scoped, tag = 'scoped memory for _block_fwd.1']
    #allocation5 [shape = 'u8[98304]{0}', space=vmem, size = 0x18000, scoped, tag = 'input window, operand 3, single buffered']
    #allocation6 [shape = 's32[1]{0}', space=sflag, size = 0x4, scoped, tag = 'scoped memory for _block_fwd.1']
    #allocation7 [shape = 'u8[32768]{0}', space=vmem, size = 0x8000, scoped, tag = 'input window, operand 4, single buffered']
    #allocation8 [shape = 'u8[131072]{0}', space=vmem, size = 0x20000, scoped, tag = 'input window, operand 8, single buffered']
    #allocation9 [shape = 's32[1]{0}', space=sflag, size = 0x4, scoped, tag = 'scoped memory for _block_fwd.1']
    #allocation10 [shape = 'u8[2048]{0}', space=vmem, size = 0x800, scoped, tag = 'input window, operand 9, single buffered']
    #allocation11 [shape = 'u8[131072]{0}', space=vmem, size = 0x20000, scoped, tag = 'input window, operand 10, single buffered']
    #allocation12 [shape = 's32[1]{0}', space=sflag, size = 0x4, scoped, tag = 'scoped memory for _block_fwd.1']
    #allocation13 [shape = 'u8[16384]{0}', space=vmem, size = 0x4000, scoped, tag = 'output window, operand 0, single buffered']
    %17 = vsyncpa [#allocation3], 0
    %18 = vsyncpa [#allocation6], 0
    %19 = vsyncpa [#allocation9], 0
    %20 = vsyncpa [#allocation12], 0
    %21 = vsyncpa [#allocation4], 0
    // Predicated region
    $region2: #{_block_fwd.1} parent=1 // pred_check
      _
    $region3: #{_block_fwd.1} parent=1 // pred_check_branch
      %23 = sbr.rel (0) target = $region5
    $region4: #{_block_fwd.1} parent=1 // pred_region
      %s25 = ssub.s32 512, 512
      %26 = vsyncadd [#allocation3], %s25
      %s27 = sshll.u32 [#allocation2], 4
      %s28 = int_to_ptr.vmem [resolvable:$true] %s27
      %33 = dma.hbm_to_vmem [thread:$0]  %s0, 512, %s28, [#allocation3], 128, 128, 8
    $region5: #{_block_fwd.1} parent=1 // pred_fallthru
      _
    // Predicated region
    $region6: #{_block_fwd.1} parent=1 // pred_check
      _
    $region7: #{_block_fwd.1} parent=1 // pred_check_branch
      %35 = sbr.rel (0) target = $region9
    $region8: #{_block_fwd.1} parent=1 // pred_region
      _
    $region9: #{_block_fwd.1} parent=1 // pred_fallthru
      _
    // Predicated region
    $region10: #{_block_fwd.1} parent=1 // pred_check
      _
    $region11: #{_block_fwd.1} parent=1 // pred_check_branch
      %37 = sbr.rel (0) target = $region13
    $region12: #{_block_fwd.1} parent=1 // pred_region
      _
    $region13: #{_block_fwd.1} parent=1 // pred_fallthru
      _
    // Predicated region
    $region14: #{_block_fwd.1} parent=1 // pred_check
      _
    $region15: #{_block_fwd.1} parent=1 // pred_check_branch
      %39 = sbr.rel (0) target = $region17
    $region16: #{_block_fwd.1} parent=1 // pred_region
      %s41 = ssub.s32 3072, 3072
      %42 = vsyncadd [#allocation6], %s41
      %s43 = sshll.u32 [#allocation5], 4
      %s44 = int_to_ptr.vmem [resolvable:$true] %s43
      %49 = dma.hbm_to_vmem [thread:$0]  %s3, 3072, %s44, [#allocation6], 192, 192, 12
    $region17: #{_block_fwd.1} parent=1 // pred_fallthru
      _
    // Predicated region
    $region18: #{_block_fwd.1} parent=1 // pred_check
      _
    $region19: #{_block_fwd.1} parent=1 // pred_check_branch
      %51 = sbr.rel (0) target = $region21
    $region20: #{_block_fwd.1} parent=1 // pred_region
      %s53 = ssub.s32 1024, 1024
      %54 = vsyncadd [#allocation6], %s53
      %s55 = sshll.u32 [#allocation7], 4
      %s56 = int_to_ptr.vmem [resolvable:$true] %s55
      %61 = dma.hbm_to_vmem [thread:$0]  %s4, 1024, %s56, [#allocation6], 64, 64, 4
    $region21: #{_block_fwd.1} parent=1 // pred_fallthru
      _
    // Predicated region
    $region22: #{_block_fwd.1} parent=1 // pred_check
      _
    $region23: #{_block_fwd.1} parent=1 // pred_check_branch
      %63 = sbr.rel (0) target = $region25
    $region24: #{_block_fwd.1} parent=1 // pred_region
      _
    $region25: #{_block_fwd.1} parent=1 // pred_fallthru
      _
    // Predicated region
    $region26: #{_block_fwd.1} parent=1 // pred_check
      _
    $region27: #{_block_fwd.1} parent=1 // pred_check_branch
      %65 = sbr.rel (0) target = $region29
    $region28: #{_block_fwd.1} parent=1 // pred_region
      _
    $region29: #{_block_fwd.1} parent=1 // pred_fallthru
      _
    // Predicated region
    $region30: #{_block_fwd.1} parent=1 // pred_check
      _
    $region31: #{_block_fwd.1} parent=1 // pred_check_branch
      %67 = sbr.rel (0) target = $region33
    $region32: #{_block_fwd.1} parent=1 // pred_region
      _
    $region33: #{_block_fwd.1} parent=1 // pred_fallthru
      _
    // Predicated region
    $region34: #{_block_fwd.1} parent=1 // pred_check
      _
    $region35: #{_block_fwd.1} parent=1 // pred_check_branch
      %69 = sbr.rel (0) target = $region37
    $region36: #{_block_fwd.1} parent=1 // pred_region
      %s71 = ssub.s32 4096, 4096
      %72 = vsyncadd [#allocation9], %s71
      %s73 = sshll.u32 [#allocation8], 4
      %s74 = int_to_ptr.vmem [resolvable:$true] %s73
      %79 = dma.hbm_to_vmem [thread:$0]  %s8, 4096, %s74, [#allocation9], 256, 256, 16
    $region37: #{_block_fwd.1} parent=1 // pred_fallthru
      _
    // Predicated region
    $region38: #{_block_fwd.1} parent=1 // pred_check
      _
    $region39: #{_block_fwd.1} parent=1 // pred_check_branch
      %81 = sbr.rel (0) target = $region41
    $region40: #{_block_fwd.1} parent=1 // pred_region
      %s83 = ssub.s32 64, 64
      %84 = vsyncadd [#allocation9], %s83
      %s86 = sshll.u32 [#allocation10], 4
      %s87 = int_to_ptr.vmem [resolvable:$true] %s86
      %89 = dma.hbm_to_vmem [thread:$0]  %s9, 64, %s87, [#allocation9]
    $region41: #{_block_fwd.1} parent=1 // pred_fallthru
      _
    // Predicated region
    $region42: #{_block_fwd.1} parent=1 // pred_check
      _
    $region43: #{_block_fwd.1} parent=1 // pred_check_branch
      %91 = sbr.rel (0) target = $region45
    $region44: #{_block_fwd.1} parent=1 // pred_region
      %s93 = ssub.s32 4096, 4096
      %94 = vsyncadd [#allocation12], %s93
      %s95 = sshll.u32 [#allocation11], 4
      %s96 = int_to_ptr.vmem [resolvable:$true] %s95
      %101 = dma.hbm_to_vmem [thread:$0]  %s10, 4096, %s96, [#allocation12], 64, 64, 4
    $region45: #{_block_fwd.1} parent=1 // pred_fallthru
      _
    // Predicated region
    $region46: #{_block_fwd.1} parent=1 // pred_check
      _
    $region47: #{_block_fwd.1} parent=1 // pred_check_branch
      %103 = sbr.rel (0) target = $region49
    $region48: #{_block_fwd.1} parent=1 // pred_region
      _
    $region49: #{_block_fwd.1} parent=1 // pred_fallthru
      _
    // Predicated region
    $region50: #{_block_fwd.1} parent=1 // pred_check
      _
    $region51: #{_block_fwd.1} parent=1 // pred_check_branch
      %105 = sbr.rel (0) target = $region53
    $region52: #{_block_fwd.1} parent=1 // pred_region
      %106 = dma.done [#allocation3], 512
    $region53: #{_block_fwd.1} parent=1 // pred_fallthru
      _
    // Predicated region
    $region54: #{_block_fwd.1} parent=1 // pred_check
      _
    $region55: #{_block_fwd.1} parent=1 // pred_check_branch
      %108 = sbr.rel (0) target = $region57
    $region56: #{_block_fwd.1} parent=1 // pred_region
      %109 = dma.done [#allocation6], 3072
    $region57: #{_block_fwd.1} parent=1 // pred_fallthru
      _
    // Predicated region
    $region58: #{_block_fwd.1} parent=1 // pred_check
      _
    $region59: #{_block_fwd.1} parent=1 // pred_check_branch
      %111 = sbr.rel (0) target = $region61
    $region60: #{_block_fwd.1} parent=1 // pred_region
      %112 = dma.done [#allocation6], 1024
    $region61: #{_block_fwd.1} parent=1 // pred_fallthru
      _
    // Predicated region
    $region62: #{_block_fwd.1} parent=1 // pred_check
      _
    $region63: #{_block_fwd.1} parent=1 // pred_check_branch
      %114 = sbr.rel (0) target = $region65
    $region64: #{_block_fwd.1} parent=1 // pred_region
      %115 = dma.done [#allocation9], 4096
    $region65: #{_block_fwd.1} parent=1 // pred_fallthru
      _
    // Predicated region
    $region66: #{_block_fwd.1} parent=1 // pred_check
      _
    $region67: #{_block_fwd.1} parent=1 // pred_check_branch
      %117 = sbr.rel (0) target = $region69
    $region68: #{_block_fwd.1} parent=1 // pred_region
      %118 = dma.done [#allocation9], 64
    $region69: #{_block_fwd.1} parent=1 // pred_fallthru
      _
    // Predicated region
    $region70: #{_block_fwd.1} parent=1 // pred_check
      _
    $region71: #{_block_fwd.1} parent=1 // pred_check_branch
      %120 = sbr.rel (0) target = $region73
    $region72: #{_block_fwd.1} parent=1 // pred_region
      %121 = dma.done [#allocation12], 4096
    $region73: #{_block_fwd.1} parent=1 // pred_fallthru
      _
    %v123 = vld [vmem:[#allocation2] sm:$0xff]
    %v124 = vld [vmem:[#allocation2 + $0x8] sm:$0xff]
    %v125 = vld [vmem:[#allocation2 + $0x10] sm:$0xff]
    %v126 = vld [vmem:[#allocation2 + $0x18] sm:$0xff]
    %v127 = vld [vmem:[%s1] sm:$0x1]
    %v128 = vld [vmem:[%s2] sm:$0x1]
    %129 = vadd.xlane.f32.xlu0 %v123
    %v130 = vpop.xlane.xlu0 %129
    %131 = vadd.xlane.f32.xlu0 %v124
    %v132 = vpop.xlane.xlu0 %131
    %133 = vadd.xlane.f32.xlu0 %v125
    %v134 = vpop.xlane.xlu0 %133
    %135 = vadd.xlane.f32.xlu0 %v126
    %v136 = vpop.xlane.xlu0 %135
    %v137 = vrcp.pop 128.0
    %v138 = vmul.f32 %v130, %v137
    %v139 = vmul.f32 %v132, %v137
    %v140 = vmul.f32 %v134, %v137
    %v141 = vmul.f32 %v136, %v137
    %v142 = vmul.f32 %v123, %v123
    %v143 = vmul.f32 %v124, %v124
    %v144 = vmul.f32 %v125, %v125
    %v145 = vmul.f32 %v126, %v126
    %146 = vadd.xlane.f32.xlu0 %v142
    %v147 = vpop.xlane.xlu0 %146
    %148 = vadd.xlane.f32.xlu0 %v143
    %v149 = vpop.xlane.xlu0 %148
    %150 = vadd.xlane.f32.xlu0 %v144
    %v151 = vpop.xlane.xlu0 %150
    %152 = vadd.xlane.f32.xlu0 %v145
    %v153 = vpop.xlane.xlu0 %152
    %v154 = vmul.f32 %v147, %v137
    %v155 = vmul.f32 %v149, %v137
    %v156 = vmul.f32 %v151, %v137
    %v157 = vmul.f32 %v153, %v137
    %v158 = vmul.f32 %v138, %v138
    %v159 = vmul.f32 %v139, %v139
    %v160 = vmul.f32 %v140, %v140
    %v161 = vmul.f32 %v141, %v141
    %v162 = vsub.f32 %v154, %v158
    %v163 = vsub.f32 %v155, %v159
    %v164 = vsub.f32 %v156, %v160
    %v165 = vsub.f32 %v157, %v161
    %v166 = vmax.f32 %v162, 0.0
    %v167 = vmax.f32 %v163, 0.0
    %v168 = vmax.f32 %v164, 0.0
    %v169 = vmax.f32 %v165, 0.0
    %v170 = vsub.f32 %v123, %v138
    %v171 = vsub.f32 %v124, %v139
    %v172 = vsub.f32 %v125, %v140
    %v173 = vsub.f32 %v126, %v141
    %v174 = vadd.f32 %v166, 1e-05
    %v175 = vadd.f32 %v167, 1e-05
    %v176 = vadd.f32 %v168, 1e-05
    %v177 = vadd.f32 %v169, 1e-05
    %v178 = vrsqrt.pop %v174
    %v179 = vrsqrt.pop %v175
    %v180 = vrsqrt.pop %v176
    %v181 = vrsqrt.pop %v177
    %v182 = vmul.f32 %v170, %v178
    %v183 = vmul.f32 %v171, %v179
    %v184 = vmul.f32 %v172, %v180
    %v185 = vmul.f32 %v173, %v181
    %v187 = vlaneseq
    %v188 = vshrl.u32 %v187, 7
    %v189 = vsub.s32 0, %v188
    %v190 = vrot.slane %v127, %v189
    %v192 = vmul.f32 %v182, %v190
    %v193 = vmul.f32 %v183, %v190
    %v194 = vmul.f32 %v184, %v190
    %v195 = vmul.f32 %v185, %v190
    %v197 = vlaneseq
    %v198 = vshrl.u32 %v197, 7
    %v199 = vsub.s32 0, %v198
    %v200 = vrot.slane %v128, %v199
    %v202 = vadd.f32 %v192, %v200
    %v203 = vadd.f32 %v193, %v200
    %v204 = vadd.f32 %v194, %v200
    %v205 = vadd.f32 %v195, %v200
    %v206 = vpack.c.bf16 %v203, %v202
    %v207 = vpack.c.bf16 %v205, %v204
    %v208 = vld [vmem:[#allocation5] sm:$0xff]
    %v209 = vld [vmem:[#allocation5 + $0x8] sm:$0xf]
    %v210 = vld [vmem:[#allocation5 + $0xc] sm:$0xff]
    %v211 = vld [vmem:[#allocation5 + $0x14] sm:$0xf]
    %v212 = vld [vmem:[#allocation5 + $0x18] sm:$0xff]
    %v213 = vld [vmem:[#allocation5 + $0x20] sm:$0xf]
    %v214 = vld [vmem:[#allocation5 + $0x24] sm:$0xff]
    %v215 = vld [vmem:[#allocation5 + $0x2c] sm:$0xf]
    %v216 = vld [vmem:[#allocation5 + $0x30] sm:$0xff]
    %v217 = vld [vmem:[#allocation5 + $0x38] sm:$0xf]
    %v218 = vld [vmem:[#allocation5 + $0x3c] sm:$0xff]
    %v219 = vld [vmem:[#allocation5 + $0x44] sm:$0xf]
    %v220 = vld [vmem:[#allocation5 + $0x48] sm:$0xff]
    %v221 = vld [vmem:[#allocation5 + $0x50] sm:$0xf]
    %v222 = vld [vmem:[#allocation5 + $0x54] sm:$0xff]
    %v223 = vld [vmem:[#allocation5 + $0x5c] sm:$0xf]
    %v224 = vld [vmem:[#allocation5 + $0x60] sm:$0xff]
    %v225 = vld [vmem:[#allocation5 + $0x68] sm:$0xf]
    %v226 = vld [vmem:[#allocation5 + $0x6c] sm:$0xff]
    %v227 = vld [vmem:[#allocation5 + $0x74] sm:$0xf]
    %v228 = vld [vmem:[#allocation5 + $0x78] sm:$0xff]
    %v229 = vld [vmem:[#allocation5 + $0x80] sm:$0xf]
    %v230 = vld [vmem:[#allocation5 + $0x84] sm:$0xff]
    %v231 = vld [vmem:[#allocation5 + $0x8c] sm:$0xf]
    %v232 = vld [vmem:[#allocation5 + $0x90] sm:$0xff]
    %v233 = vld [vmem:[#allocation5 + $0x98] sm:$0xf]
    %v234 = vld [vmem:[#allocation5 + $0x9c] sm:$0xff]
    %v235 = vld [vmem:[#allocation5 + $0xa4] sm:$0xf]
    %v236 = vld [vmem:[#allocation5 + $0xa8] sm:$0xff]
    %v237 = vld [vmem:[#allocation5 + $0xb0] sm:$0xf]
    %v238 = vld [vmem:[#allocation5 + $0xb4] sm:$0xff]
    %v239 = vld [vmem:[#allocation5 + $0xbc] sm:$0xf]
    %v272 = vunpack.c.l.b16 %v208
    %v273 = vunpack.c.h.b16 %v208
    %v274 = vunpack.c.l.b16 %v209
    %v275 = vunpack.c.l.b16 %v210
    %v276 = vunpack.c.h.b16 %v210
    %v277 = vunpack.c.l.b16 %v211
    %v278 = vunpack.c.l.b16 %v212
    %v279 = vunpack.c.h.b16 %v212
    %v280 = vunpack.c.l.b16 %v213
    %v281 = vunpack.c.l.b16 %v214
    %v282 = vunpack.c.h.b16 %v214
    %v283 = vunpack.c.l.b16 %v215
    %v284 = vunpack.c.l.b16 %v216
    %v285 = vunpack.c.h.b16 %v216
    %v286 = vunpack.c.l.b16 %v217
    %v287 = vunpack.c.l.b16 %v218
    %v288 = vunpack.c.h.b16 %v218
    %v289 = vunpack.c.l.b16 %v219
    %v290 = vunpack.c.l.b16 %v220
    %v291 = vunpack.c.h.b16 %v220
    %v292 = vunpack.c.l.b16 %v221
    %v293 = vunpack.c.l.b16 %v222
    %v294 = vunpack.c.h.b16 %v222
    %v295 = vunpack.c.l.b16 %v223
    %v296 = vunpack.c.l.b16 %v224
    %v297 = vunpack.c.h.b16 %v224
    %v298 = vunpack.c.l.b16 %v225
    %v299 = vunpack.c.l.b16 %v226
    %v300 = vunpack.c.h.b16 %v226
    %v301 = vunpack.c.l.b16 %v227
    %v302 = vunpack.c.l.b16 %v228
    %v303 = vunpack.c.h.b16 %v228
    %v304 = vunpack.c.l.b16 %v229
    %v305 = vunpack.c.l.b16 %v230
    %v306 = vunpack.c.h.b16 %v230
    %v307 = vunpack.c.l.b16 %v231
    %v308 = vunpack.c.l.b16 %v232
    %v309 = vunpack.c.h.b16 %v232
    %v310 = vunpack.c.l.b16 %v233
    %v311 = vunpack.c.l.b16 %v234
    %v312 = vunpack.c.h.b16 %v234
    %v313 = vunpack.c.l.b16 %v235
    %v314 = vunpack.c.l.b16 %v236
    %v315 = vunpack.c.h.b16 %v236
    %v316 = vunpack.c.l.b16 %v237
    %v317 = vunpack.c.l.b16 %v238
    %v318 = vunpack.c.h.b16 %v238
    %v319 = vunpack.c.l.b16 %v239
    %v320 = vpack.c.b16 %v275, %v272
    %v321 = vpack.c.b16 %v276, %v273
    %v322 = vpack.c.b16 %v277, %v274
    %v323 = vpack.c.b16 %v281, %v278
    %v324 = vpack.c.b16 %v282, %v279
    %v325 = vpack.c.b16 %v283, %v280
    %v326 = vpack.c.b16 %v287, %v284
    %v327 = vpack.c.b16 %v288, %v285
    %v328 = vpack.c.b16 %v289, %v286
    %v329 = vpack.c.b16 %v293, %v290
    %v330 = vpack.c.b16 %v294, %v291
    %v331 = vpack.c.b16 %v295, %v292
    %v332 = vpack.c.b16 %v299, %v296
    %v333 = vpack.c.b16 %v300, %v297
    %v334 = vpack.c.b16 %v301, %v298
    %v335 = vpack.c.b16 %v305, %v302
    %v336 = vpack.c.b16 %v306, %v303
    %v337 = vpack.c.b16 %v307, %v304
    %v338 = vpack.c.b16 %v311, %v308
    %v339 = vpack.c.b16 %v312, %v309
    %v340 = vpack.c.b16 %v313, %v310
    %v341 = vpack.c.b16 %v317, %v314
    %v342 = vpack.c.b16 %v318, %v315
    %v343 = vpack.c.b16 %v319, %v316
    %368 = vmatprep.subr.bf16.mxu0 %v321
    %369 = vmatpush1.bf16.msra.mxu0 %v320
    %370 = vmatprep.subr.bf16.mxu0 %v324
    %371 = vmatpush1.bf16.msra.mxu0 %v323
    %372 = vmatprep.subr.bf16.mxu0 %v327
    %373 = vmatpush1.bf16.msra.mxu0 %v326
    %374 = vmatprep.subr.bf16.mxu0 %v330
    %375 = vmatpush1.bf16.msra.mxu0 %v329
    %376 = vmatprep.subr.bf16.mxu0 %v333
    %377 = vmatpush1.bf16.msra.mxu0 %v332
    %378 = vmatprep.subr.bf16.mxu0 %v336
    %379 = vmatpush1.bf16.msra.mxu0 %v335
    %380 = vmatprep.subr.bf16.mxu0 %v339
    %381 = vmatpush1.bf16.msra.mxu0 %v338
    %382 = vmatprep.subr.bf16.mxu0 %v342
    %383 = vmatpush1.bf16.msra.mxu0 %v341
    %384 = vmatprep.subr.bf16.mxu0 0
    %385 = vmatpush1.bf16.msra.mxu0 0
    %386 = vmatprep.subr.bf16.mxu0 0
    %387 = vmatpush1.bf16.msra.mxu0 0
    %388 = vmatprep.subr.bf16.mxu0 0
    %389 = vmatpush1.bf16.msra.mxu0 0
    %390 = vmatprep.subr.bf16.mxu0 0
    %391 = vmatpush1.bf16.msra.mxu0 0
    %392 = vmatprep.subr.bf16.mxu0 0
    %393 = vmatpush1.bf16.msra.mxu0 0
    %394 = vmatprep.subr.bf16.mxu0 0
    %395 = vmatpush1.bf16.msra.mxu0 0
    %396 = vmatprep.subr.bf16.mxu0 0
    %397 = vmatpush1.bf16.msra.mxu0 0
    %398 = vmatprep.subr.bf16.mxu0 0
    %399 = vmatpush1.bf16.msra.mxu0 0
    %400 = vmatprep.mubr.bf16.mxu0 0
    %401 = vmatmul.mubr.bf16.gmra.mrb[0].mxu0 %v206
    %v402 = vpop.f32.mrb[0].mxu0
    %v403 = vadd.f32 0.0, %v402
    %v404 = vpop.f32.mrb[0].mxu0
    %v405 = vadd.f32 0.0, %v404
    %v406 = vpop.f32.mrb[0].mxu0
    %v407 = vadd.f32 0.0, %v406
    %v408 = vpop.f32.mrb[0].mxu0
    %v409 = vadd.f32 0.0, %v408
    %410 = vmatprep.mubr.bf16.mxu0 0
    %411 = vmatmul.mubr.bf16.gmra.mrb[0].mxu0 %v207
    %v412 = vpop.f32.mrb[0].mxu0
    %v413 = vadd.f32 0.0, %v412
    %v414 = vpop.f32.mrb[0].mxu0
    %v415 = vadd.f32 0.0, %v414
    %v416 = vpop.f32.mrb[0].mxu0
    %v417 = vadd.f32 0.0, %v416
    %v418 = vpop.f32.mrb[0].mxu0
    %v419 = vadd.f32 0.0, %v418
    %420 = vdwg.mxu0
    %421 = vmatprep.subr.bf16.mxu0 0
    %422 = vmatpush1.bf16.msra.mxu0 %v322
    %423 = vmatprep.subr.bf16.mxu0 0
    %424 = vmatpush1.bf16.msra.mxu0 %v325
    %425 = vmatprep.subr.bf16.mxu0 0
    %426 = vmatpush1.bf16.msra.mxu0 %v328
    %427 = vmatprep.subr.bf16.mxu0 0
    %428 = vmatpush1.bf16.msra.mxu0 %v331
    %429 = vmatprep.subr.bf16.mxu0 0
    %430 = vmatpush1.bf16.msra.mxu0 %v334
    %431 = vmatprep.subr.bf16.mxu0 0
    %432 = vmatpush1.bf16.msra.mxu0 %v337
    %433 = vmatprep.subr.bf16.mxu0 0
    %434 = vmatpush1.bf16.msra.mxu0 %v340
    %435 = vmatprep.subr.bf16.mxu0 0
    %436 = vmatpush1.bf16.msra.mxu0 %v343
    %437 = vmatprep.subr.bf16.mxu0 0
    %438 = vmatpush1.bf16.msra.mxu0 0
    %439 = vmatprep.subr.bf16.mxu0 0
    %440 = vmatpush1.bf16.msra.mxu0 0
    %441 = vmatprep.subr.bf16.mxu0 0
    %442 = vmatpush1.bf16.msra.mxu0 0
    %443 = vmatprep.subr.bf16.mxu0 0
    %444 = vmatpush1.bf16.msra.mxu0 0
    %445 = vmatprep.subr.bf16.mxu0 0
    %446 = vmatpush1.bf16.msra.mxu0 0
    %447 = vmatprep.subr.bf16.mxu0 0
    %448 = vmatpush1.bf16.msra.mxu0 0
    %449 = vmatprep.subr.bf16.mxu0 0
    %450 = vmatpush1.bf16.msra.mxu0 0
    %451 = vmatprep.subr.bf16.mxu0 0
    %452 = vmatpush1.bf16.msra.mxu0 0
    %453 = vmatprep.mubr.bf16.mxu0 0
    %454 = vmatmul.mubr.bf16.gmra.mrb[0].mxu0 %v206
    %v455 = vpop.f32.mrb[0].mxu0
    %v456 = vadd.f32 0.0, %v455
    %v457 = vpop.f32.mrb[0].mxu0
    %v458 = vpop.f32.mrb[0].mxu0
    %v459 = vadd.f32 0.0, %v458
    %v460 = vpop.f32.mrb[0].mxu0
    %461 = vmatprep.mubr.bf16.mxu0 0
    %462 = vmatmul.mubr.bf16.gmra.mrb[0].mxu0 %v207
    %v463 = vpop.f32.mrb[0].mxu0
    %v464 = vadd.f32 0.0, %v463
    %v465 = vpop.f32.mrb[0].mxu0
    %v466 = vpop.f32.mrb[0].mxu0
    %v467 = vadd.f32 0.0, %v466
    %v468 = vpop.f32.mrb[0].mxu0
    %469 = vdwg.mxu0
    %v470 = vmul.f32 %v403, 0.088388346
    %v471 = vmul.f32 %v407, 0.088388346
    %v472 = vmul.f32 %v413, 0.088388346
    %v473 = vmul.f32 %v417, 0.088388346
    %v474 = vpack.c.bf16 %v471, %v470
    %v475 = vpack.c.bf16 %v473, %v472
    %v476 = vpack.c.bf16 %v409, %v405
    %v477 = vpack.c.bf16 %v419, %v415
    %v478 = vpack.c.bf16 %v459, %v456
    %v479 = vpack.c.bf16 %v467, %v464
    %482 = vrot.lane.b32.xlu0 %v474, 96
    %v483 = vpop.permute.xlu0 %482
    %484 = vrot.lane.b32.xlu0 %v475, 96
    %v485 = vpop.permute.xlu0 %484
    %486 = vrot.lane.b32.xlu0 %v474, 64
    %v487 = vpop.permute.xlu0 %486
    %488 = vrot.lane.b32.xlu0 %v475, 64
    %v489 = vpop.permute.xlu0 %488
    %490 = vrot.lane.b32.xlu0 %v474, 32
    %v491 = vpop.permute.xlu0 %490
    %492 = vrot.lane.b32.xlu0 %v475, 32
    %v493 = vpop.permute.xlu0 %492
    %496 = vrot.lane.b32.xlu0 %v476, 96
    %v497 = vpop.permute.xlu0 %496
    %498 = vrot.lane.b32.xlu0 %v477, 96
    %v499 = vpop.permute.xlu0 %498
    %500 = vrot.lane.b32.xlu0 %v476, 64
    %v501 = vpop.permute.xlu0 %500
    %502 = vrot.lane.b32.xlu0 %v477, 64
    %v503 = vpop.permute.xlu0 %502
    %504 = vrot.lane.b32.xlu0 %v476, 32
    %v505 = vpop.permute.xlu0 %504
    %506 = vrot.lane.b32.xlu0 %v477, 32
    %v507 = vpop.permute.xlu0 %506
    %510 = vrot.lane.b32.xlu0 %v478, 96
    %v511 = vpop.permute.xlu0 %510
    %512 = vrot.lane.b32.xlu0 %v479, 96
    %v513 = vpop.permute.xlu0 %512
    %516 = vrot.lane.b32.xlu0 %v478, 64
    %v517 = vpop.permute.xlu0 %516
    %518 = vrot.lane.b32.xlu0 %v479, 64
    %v519 = vpop.permute.xlu0 %518
    %522 = vrot.lane.b32.xlu0 %v478, 32
    %v523 = vpop.permute.xlu0 %522
    %524 = vrot.lane.b32.xlu0 %v479, 32
    %v525 = vpop.permute.xlu0 %524
    %v528 = vlaneseq
    %v529 = vshrl.u32 %v528, 7
    %v530 = vadd.s32 %v529, 8
    %v531 = vlaneseq
    %v532 = vand.u32 %v531, 127
    %vm533 = vcmp.ge.s32.totalorder %v529, %v532
    %vm534 = vcmp.ge.s32.totalorder %v530, %v532
    %vm535 = vcmask 261120
    %v537 = vsel %vm535, %v474, 0
    %v540 = vsel %vm535, %v476, 0
    %542 = vmatprep.subr.bf16.mxu0 0
    %543 = vmatpush1.bf16.xpose.msra.mxu0 %v540
    %544 = vmatprep.subr.bf16.mxu0 0
    %545 = vmatpush1.bf16.xpose.msra.mxu0 0
    %546 = vmatprep.subr.bf16.mxu0 0
    %547 = vmatpush1.bf16.xpose.msra.mxu0 0
    %548 = vmatprep.subr.bf16.mxu0 0
    %549 = vmatpush1.bf16.xpose.msra.mxu0 0
    %550 = vmatprep.subr.bf16.mxu0 0
    %551 = vmatpush1.bf16.xpose.msra.mxu0 0
    %552 = vmatprep.subr.bf16.mxu0 0
    %553 = vmatpush1.bf16.xpose.msra.mxu0 0
    %554 = vmatprep.subr.bf16.mxu0 0
    %555 = vmatpush1.bf16.xpose.msra.mxu0 0
    %556 = vmatprep.subr.bf16.mxu0 0
    %557 = vmatpush1.bf16.xpose.msra.mxu0 0
    %558 = vmatprep.subr.bf16.mxu0 0
    %559 = vmatpush1.bf16.xpose.msra.mxu0 0
    %560 = vmatprep.subr.bf16.mxu0 0
    %561 = vmatpush1.bf16.xpose.msra.mxu0 0
    %562 = vmatprep.subr.bf16.mxu0 0
    %563 = vmatpush1.bf16.xpose.msra.mxu0 0
    %564 = vmatprep.subr.bf16.mxu0 0
    %565 = vmatpush1.bf16.xpose.msra.mxu0 0
    %566 = vmatprep.subr.bf16.mxu0 0
    %567 = vmatpush1.bf16.xpose.msra.mxu0 0
    %568 = vmatprep.subr.bf16.mxu0 0
    %569 = vmatpush1.bf16.xpose.msra.mxu0 0
    %570 = vmatprep.subr.bf16.mxu0 0
    %571 = vmatpush1.bf16.xpose.msra.mxu0 0
    %572 = vmatprep.subr.bf16.mxu0 0
    %573 = vmatpush1.bf16.xpose.msra.mxu0 0
    %574 = vmatprep.mubr.bf16.mxu0 0
    %575 = vmatmul.mubr.bf16.gmra.mrb[0].mxu0 %v537
    %v576 = vpop.f32.mrb[0].mxu0
    %v577 = vadd.f32 0.0, %v576
    %v578 = vpop.f32.mrb[0].mxu0
    %v579 = vpop.f32.mrb[0].mxu0
    %v580 = vadd.f32 0.0, %v579
    %v581 = vpop.f32.mrb[0].mxu0
    %582 = vdwg.mxu0
    %v584 = vsel %vm535, %v475, 0
    %v587 = vsel %vm535, %v477, 0
    %589 = vmatprep.subr.bf16.mxu0 0
    %590 = vmatpush1.bf16.xpose.msra.mxu0 %v587
    %591 = vmatprep.subr.bf16.mxu0 0
    %592 = vmatpush1.bf16.xpose.msra.mxu0 0
    %593 = vmatprep.subr.bf16.mxu0 0
    %594 = vmatpush1.bf16.xpose.msra.mxu0 0
    %595 = vmatprep.subr.bf16.mxu0 0
    %596 = vmatpush1.bf16.xpose.msra.mxu0 0
    %597 = vmatprep.subr.bf16.mxu0 0
    %598 = vmatpush1.bf16.xpose.msra.mxu0 0
    %599 = vmatprep.subr.bf16.mxu0 0
    %600 = vmatpush1.bf16.xpose.msra.mxu0 0
    %601 = vmatprep.subr.bf16.mxu0 0
    %602 = vmatpush1.bf16.xpose.msra.mxu0 0
    %603 = vmatprep.subr.bf16.mxu0 0
    %604 = vmatpush1.bf16.xpose.msra.mxu0 0
    %605 = vmatprep.subr.bf16.mxu0 0
    %606 = vmatpush1.bf16.xpose.msra.mxu0 0
    %607 = vmatprep.subr.bf16.mxu0 0
    %608 = vmatpush1.bf16.xpose.msra.mxu0 0
    %609 = vmatprep.subr.bf16.mxu0 0
    %610 = vmatpush1.bf16.xpose.msra.mxu0 0
    %611 = vmatprep.subr.bf16.mxu0 0
    %612 = vmatpush1.bf16.xpose.msra.mxu0 0
    %613 = vmatprep.subr.bf16.mxu0 0
    %614 = vmatpush1.bf16.xpose.msra.mxu0 0
    %615 = vmatprep.subr.bf16.mxu0 0
    %616 = vmatpush1.bf16.xpose.msra.mxu0 0
    %617 = vmatprep.subr.bf16.mxu0 0
    %618 = vmatpush1.bf16.xpose.msra.mxu0 0
    %619 = vmatprep.subr.bf16.mxu0 0
    %620 = vmatpush1.bf16.xpose.msra.mxu0 0
    %621 = vmatprep.mubr.bf16.mxu0 0
    %622 = vmatmul.mubr.bf16.gmra.mrb[0].mxu0 %v584
    %v623 = vpop.f32.mrb[0].mxu0
    %v624 = vadd.f32 0.0, %v623
    %v625 = vpop.f32.mrb[0].mxu0
    %v626 = vpop.f32.mrb[0].mxu0
    %v627 = vadd.f32 0.0, %v626
    %v628 = vpop.f32.mrb[0].mxu0
    %629 = vdwg.mxu0
    %v631 = vsel %vm535, %v483, 0
    %v634 = vsel %vm535, %v497, 0
    %636 = vmatprep.subr.bf16.mxu0 0
    %637 = vmatpush1.bf16.xpose.msra.mxu0 %v634
    %638 = vmatprep.subr.bf16.mxu0 0
    %639 = vmatpush1.bf16.xpose.msra.mxu0 0
    %640 = vmatprep.subr.bf16.mxu0 0
    %641 = vmatpush1.bf16.xpose.msra.mxu0 0
    %642 = vmatprep.subr.bf16.mxu0 0
    %643 = vmatpush1.bf16.xpose.msra.mxu0 0
    %644 = vmatprep.subr.bf16.mxu0 0
    %645 = vmatpush1.bf16.xpose.msra.mxu0 0
    %646 = vmatprep.subr.bf16.mxu0 0
    %647 = vmatpush1.bf16.xpose.msra.mxu0 0
    %648 = vmatprep.subr.bf16.mxu0 0
    %649 = vmatpush1.bf16.xpose.msra.mxu0 0
    %650 = vmatprep.subr.bf16.mxu0 0
    %651 = vmatpush1.bf16.xpose.msra.mxu0 0
    %652 = vmatprep.subr.bf16.mxu0 0
    %653 = vmatpush1.bf16.xpose.msra.mxu0 0
    %654 = vmatprep.subr.bf16.mxu0 0
    %655 = vmatpush1.bf16.xpose.msra.mxu0 0
    %656 = vmatprep.subr.bf16.mxu0 0
    %657 = vmatpush1.bf16.xpose.msra.mxu0 0
    %658 = vmatprep.subr.bf16.mxu0 0
    %659 = vmatpush1.bf16.xpose.msra.mxu0 0
    %660 = vmatprep.subr.bf16.mxu0 0
    %661 = vmatpush1.bf16.xpose.msra.mxu0 0
    %662 = vmatprep.subr.bf16.mxu0 0
    %663 = vmatpush1.bf16.xpose.msra.mxu0 0
    %664 = vmatprep.subr.bf16.mxu0 0
    %665 = vmatpush1.bf16.xpose.msra.mxu0 0
    %666 = vmatprep.subr.bf16.mxu0 0
    %667 = vmatpush1.bf16.xpose.msra.mxu0 0
    %668 = vmatprep.mubr.bf16.mxu0 0
    %669 = vmatmul.mubr.bf16.gmra.mrb[0].mxu0 %v631
    %v670 = vpop.f32.mrb[0].mxu0
    %v671 = vadd.f32 0.0, %v670
    %v672 = vpop.f32.mrb[0].mxu0
    %v673 = vpop.f32.mrb[0].mxu0
    %v674 = vadd.f32 0.0, %v673
    %v675 = vpop.f32.mrb[0].mxu0
    %676 = vdwg.mxu0
    %v678 = vsel %vm535, %v485, 0
    %v681 = vsel %vm535, %v499, 0
    %683 = vmatprep.subr.bf16.mxu0 0
    %684 = vmatpush1.bf16.xpose.msra.mxu0 %v681
    %685 = vmatprep.subr.bf16.mxu0 0
    %686 = vmatpush1.bf16.xpose.msra.mxu0 0
    %687 = vmatprep.subr.bf16.mxu0 0
    %688 = vmatpush1.bf16.xpose.msra.mxu0 0
    %689 = vmatprep.subr.bf16.mxu0 0
    %690 = vmatpush1.bf16.xpose.msra.mxu0 0
    %691 = vmatprep.subr.bf16.mxu0 0
    %692 = vmatpush1.bf16.xpose.msra.mxu0 0
    %693 = vmatprep.subr.bf16.mxu0 0
    %694 = vmatpush1.bf16.xpose.msra.mxu0 0
    %695 = vmatprep.subr.bf16.mxu0 0
    %696 = vmatpush1.bf16.xpose.msra.mxu0 0
    %697 = vmatprep.subr.bf16.mxu0 0
    %698 = vmatpush1.bf16.xpose.msra.mxu0 0
    %699 = vmatprep.subr.bf16.mxu0 0
    %700 = vmatpush1.bf16.xpose.msra.mxu0 0
    %701 = vmatprep.subr.bf16.mxu0 0
    %702 = vmatpush1.bf16.xpose.msra.mxu0 0
    %703 = vmatprep.subr.bf16.mxu0 0
    %704 = vmatpush1.bf16.xpose.msra.mxu0 0
    %705 = vmatprep.subr.bf16.mxu0 0
    %706 = vmatpush1.bf16.xpose.msra.mxu0 0
    %707 = vmatprep.subr.bf16.mxu0 0
    %708 = vmatpush1.bf16.xpose.msra.mxu0 0
    %709 = vmatprep.subr.bf16.mxu0 0
    %710 = vmatpush1.bf16.xpose.msra.mxu0 0
    %711 = vmatprep.subr.bf16.mxu0 0
    %712 = vmatpush1.bf16.xpose.msra.mxu0 0
    %713 = vmatprep.subr.bf16.mxu0 0
    %714 = vmatpush1.bf16.xpose.msra.mxu0 0
    %715 = vmatprep.mubr.bf16.mxu0 0
    %716 = vmatmul.mubr.bf16.gmra.mrb[0].mxu0 %v678
    %v717 = vpop.f32.mrb[0].mxu0
    %v718 = vadd.f32 0.0, %v717
    %v719 = vpop.f32.mrb[0].mxu0
    %v720 = vpop.f32.mrb[0].mxu0
    %v721 = vadd.f32 0.0, %v720
    %v722 = vpop.f32.mrb[0].mxu0
    %723 = vdwg.mxu0
    %v725 = vsel %vm535, %v487, 0
    %v728 = vsel %vm535, %v501, 0
    %730 = vmatprep.subr.bf16.mxu0 0
    %731 = vmatpush1.bf16.xpose.msra.mxu0 %v728
    %732 = vmatprep.subr.bf16.mxu0 0
    %733 = vmatpush1.bf16.xpose.msra.mxu0 0
    %734 = vmatprep.subr.bf16.mxu0 0
    %735 = vmatpush1.bf16.xpose.msra.mxu0 0
    %736 = vmatprep.subr.bf16.mxu0 0
    %737 = vmatpush1.bf16.xpose.msra.mxu0 0
    %738 = vmatprep.subr.bf16.mxu0 0
    %739 = vmatpush1.bf16.xpose.msra.mxu0 0
    %740 = vmatprep.subr.bf16.mxu0 0
    %741 = vmatpush1.bf16.xpose.msra.mxu0 0
    %742 = vmatprep.subr.bf16.mxu0 0
    %743 = vmatpush1.bf16.xpose.msra.mxu0 0
    %744 = vmatprep.subr.bf16.mxu0 0
    %745 = vmatpush1.bf16.xpose.msra.mxu0 0
    %746 = vmatprep.subr.bf16.mxu0 0
    %747 = vmatpush1.bf16.xpose.msra.mxu0 0
    %748 = vmatprep.subr.bf16.mxu0 0
    %749 = vmatpush1.bf16.xpose.msra.mxu0 0
    %750 = vmatprep.subr.bf16.mxu0 0
    %751 = vmatpush1.bf16.xpose.msra.mxu0 0
    %752 = vmatprep.subr.bf16.mxu0 0
    %753 = vmatpush1.bf16.xpose.msra.mxu0 0
    %754 = vmatprep.subr.bf16.mxu0 0
    %755 = vmatpush1.bf16.xpose.msra.mxu0 0
    %756 = vmatprep.subr.bf16.mxu0 0
    %757 = vmatpush1.bf16.xpose.msra.mxu0 0
    %758 = vmatprep.subr.bf16.mxu0 0
    %759 = vmatpush1.bf16.xpose.msra.mxu0 0
    %760 = vmatprep.subr.bf16.mxu0 0
    %761 = vmatpush1.bf16.xpose.msra.mxu0 0
    %762 = vmatprep.mubr.bf16.mxu0 0
    %763 = vmatmul.mubr.bf16.gmra.mrb[0].mxu0 %v725
    %v764 = vpop.f32.mrb[0].mxu0
    %v765 = vadd.f32 0.0, %v764
    %v766 = vpop.f32.mrb[0].mxu0
    %v767 = vpop.f32.mrb[0].mxu0
    %v768 = vadd.f32 0.0, %v767
    %v769 = vpop.f32.mrb[0].mxu0
    %770 = vdwg.mxu0
    %v772 = vsel %vm535, %v489, 0
    %v775 = vsel %vm535, %v503, 0
    %777 = vmatprep.subr.bf16.mxu0 0
    %778 = vmatpush1.bf16.xpose.msra.mxu0 %v775
    %779 = vmatprep.subr.bf16.mxu0 0
    %780 = vmatpush1.bf16.xpose.msra.mxu0 0
    %781 = vmatprep.subr.bf16.mxu0 0
    %782 = vmatpush1.bf16.xpose.msra.mxu0 0
    %783 = vmatprep.subr.bf16.mxu0 0
    %784 = vmatpush1.bf16.xpose.msra.mxu0 0
    %785 = vmatprep.subr.bf16.mxu0 0
    %786 = vmatpush1.bf16.xpose.msra.mxu0 0
    %787 = vmatprep.subr.bf16.mxu0 0
    %788 = vmatpush1.bf16.xpose.msra.mxu0 0
    %789 = vmatprep.subr.bf16.mxu0 0
    %790 = vmatpush1.bf16.xpose.msra.mxu0 0
    %791 = vmatprep.subr.bf16.mxu0 0
    %792 = vmatpush1.bf16.xpose.msra.mxu0 0
    %793 = vmatprep.subr.bf16.mxu0 0
    %794 = vmatpush1.bf16.xpose.msra.mxu0 0
    %795 = vmatprep.subr.bf16.mxu0 0
    %796 = vmatpush1.bf16.xpose.msra.mxu0 0
    %797 = vmatprep.subr.bf16.mxu0 0
    %798 = vmatpush1.bf16.xpose.msra.mxu0 0
    %799 = vmatprep.subr.bf16.mxu0 0
    %800 = vmatpush1.bf16.xpose.msra.mxu0 0
    %801 = vmatprep.subr.bf16.mxu0 0
    %802 = vmatpush1.bf16.xpose.msra.mxu0 0
    %803 = vmatprep.subr.bf16.mxu0 0
    %804 = vmatpush1.bf16.xpose.msra.mxu0 0
    %805 = vmatprep.subr.bf16.mxu0 0
    %806 = vmatpush1.bf16.xpose.msra.mxu0 0
    %807 = vmatprep.subr.bf16.mxu0 0
    %808 = vmatpush1.bf16.xpose.msra.mxu0 0
    %809 = vmatprep.mubr.bf16.mxu0 0
    %810 = vmatmul.mubr.bf16.gmra.mrb[0].mxu0 %v772
    %v811 = vpop.f32.mrb[0].mxu0
    %v812 = vadd.f32 0.0, %v811
    %v813 = vpop.f32.mrb[0].mxu0
    %v814 = vpop.f32.mrb[0].mxu0
    %v815 = vadd.f32 0.0, %v814
    %v816 = vpop.f32.mrb[0].mxu0
    %817 = vdwg.mxu0
    %v819 = vsel %vm535, %v491, 0
    %v822 = vsel %vm535, %v505, 0
    %824 = vmatprep.subr.bf16.mxu0 0
    %825 = vmatpush1.bf16.xpose.msra.mxu0 %v822
    %826 = vmatprep.subr.bf16.mxu0 0
    %827 = vmatpush1.bf16.xpose.msra.mxu0 0
    %828 = vmatprep.subr.bf16.mxu0 0
    %829 = vmatpush1.bf16.xpose.msra.mxu0 0
    %830 = vmatprep.subr.bf16.mxu0 0
    %831 = vmatpush1.bf16.xpose.msra.mxu0 0
    %832 = vmatprep.subr.bf16.mxu0 0
    %833 = vmatpush1.bf16.xpose.msra.mxu0 0
    %834 = vmatprep.subr.bf16.mxu0 0
    %835 = vmatpush1.bf16.xpose.msra.mxu0 0
    %836 = vmatprep.subr.bf16.mxu0 0
    %837 = vmatpush1.bf16.xpose.msra.mxu0 0
    %838 = vmatprep.subr.bf16.mxu0 0
    %839 = vmatpush1.bf16.xpose.msra.mxu0 0
    %840 = vmatprep.subr.bf16.mxu0 0
    %841 = vmatpush1.bf16.xpose.msra.mxu0 0
    %842 = vmatprep.subr.bf16.mxu0 0
    %843 = vmatpush1.bf16.xpose.msra.mxu0 0
    %844 = vmatprep.subr.bf16.mxu0 0
    %845 = vmatpush1.bf16.xpose.msra.mxu0 0
    %846 = vmatprep.subr.bf16.mxu0 0
    %847 = vmatpush1.bf16.xpose.msra.mxu0 0
    %848 = vmatprep.subr.bf16.mxu0 0
    %849 = vmatpush1.bf16.xpose.msra.mxu0 0
    %850 = vmatprep.subr.bf16.mxu0 0
    %851 = vmatpush1.bf16.xpose.msra.mxu0 0
    %852 = vmatprep.subr.bf16.mxu0 0
    %853 = vmatpush1.bf16.xpose.msra.mxu0 0
    %854 = vmatprep.subr.bf16.mxu0 0
    %855 = vmatpush1.bf16.xpose.msra.mxu0 0
    %856 = vmatprep.mubr.bf16.mxu0 0
    %857 = vmatmul.mubr.bf16.gmra.mrb[0].mxu0 %v819
    %v858 = vpop.f32.mrb[0].mxu0
    %v859 = vadd.f32 0.0, %v858
    %v860 = vpop.f32.mrb[0].mxu0
    %v861 = vpop.f32.mrb[0].mxu0
    %v862 = vadd.f32 0.0, %v861
    %v863 = vpop.f32.mrb[0].mxu0
    %864 = vdwg.mxu0
    %v866 = vsel %vm535, %v493, 0
    %v869 = vsel %vm535, %v507, 0
    %871 = vmatprep.subr.bf16.mxu0 0
    %872 = vmatpush1.bf16.xpose.msra.mxu0 %v869
    %873 = vmatprep.subr.bf16.mxu0 0
    %874 = vmatpush1.bf16.xpose.msra.mxu0 0
    %875 = vmatprep.subr.bf16.mxu0 0
    %876 = vmatpush1.bf16.xpose.msra.mxu0 0
    %877 = vmatprep.subr.bf16.mxu0 0
    %878 = vmatpush1.bf16.xpose.msra.mxu0 0
    %879 = vmatprep.subr.bf16.mxu0 0
    %880 = vmatpush1.bf16.xpose.msra.mxu0 0
    %881 = vmatprep.subr.bf16.mxu0 0
    %882 = vmatpush1.bf16.xpose.msra.mxu0 0
    %883 = vmatprep.subr.bf16.mxu0 0
    %884 = vmatpush1.bf16.xpose.msra.mxu0 0
    %885 = vmatprep.subr.bf16.mxu0 0
    %886 = vmatpush1.bf16.xpose.msra.mxu0 0
    %887 = vmatprep.subr.bf16.mxu0 0
    %888 = vmatpush1.bf16.xpose.msra.mxu0 0
    %889 = vmatprep.subr.bf16.mxu0 0
    %890 = vmatpush1.bf16.xpose.msra.mxu0 0
    %891 = vmatprep.subr.bf16.mxu0 0
    %892 = vmatpush1.bf16.xpose.msra.mxu0 0
    %893 = vmatprep.subr.bf16.mxu0 0
    %894 = vmatpush1.bf16.xpose.msra.mxu0 0
    %895 = vmatprep.subr.bf16.mxu0 0
    %896 = vmatpush1.bf16.xpose.msra.mxu0 0
    %897 = vmatprep.subr.bf16.mxu0 0
    %898 = vmatpush1.bf16.xpose.msra.mxu0 0
    %899 = vmatprep.subr.bf16.mxu0 0
    %900 = vmatpush1.bf16.xpose.msra.mxu0 0
    %901 = vmatprep.subr.bf16.mxu0 0
    %902 = vmatpush1.bf16.xpose.msra.mxu0 0
    %903 = vmatprep.mubr.bf16.mxu0 0
    %904 = vmatmul.mubr.bf16.gmra.mrb[0].mxu0 %v866
    %v905 = vpop.f32.mrb[0].mxu0
    %v906 = vadd.f32 0.0, %v905
    %v907 = vpop.f32.mrb[0].mxu0
    %v908 = vpop.f32.mrb[0].mxu0
    %v909 = vadd.f32 0.0, %v908
    %v910 = vpop.f32.mrb[0].mxu0
    %911 = vdwg.mxu0
    %v912 = vsel %vm533, 1, 0
    %v913 = vsel %vm534, 1, 0
    %vm914 = vcmp.eq.s32.totalorder %v912, 1
    %vm915 = vcmp.eq.s32.totalorder %v913, 1
    %v916 = vsel %vm914, %v577, -1e+30
    %v917 = vsel %vm915, %v580, -1e+30
    %v918 = vsel %vm914, %v624, -1e+30
    %v919 = vsel %vm915, %v627, -1e+30
    %v920 = vsel %vm914, %v671, -1e+30
    %v921 = vsel %vm915, %v674, -1e+30
    %v922 = vsel %vm914, %v718, -1e+30
    %v923 = vsel %vm915, %v721, -1e+30
    %v924 = vsel %vm914, %v765, -1e+30
    %v925 = vsel %vm915, %v768, -1e+30
    %v926 = vsel %vm914, %v812, -1e+30
    %v927 = vsel %vm915, %v815, -1e+30
    %v928 = vsel %vm914, %v859, -1e+30
    %v929 = vsel %vm915, %v862, -1e+30
    %v930 = vsel %vm914, %v906, -1e+30
    %v931 = vsel %vm915, %v909, -1e+30
    %vm932 = vcmask 130048
    %v933 = vsel %vm932, %v916, -inf
    %934 = vmax.xlane.f32.xlu0 %v933
    %v935 = vpop.xlane.xlu0 %934
    %v936 = vsel %vm932, %v917, -inf
    %937 = vmax.xlane.f32.xlu0 %v936
    %v938 = vpop.xlane.xlu0 %937
    %v939 = vsel %vm932, %v918, -inf
    %940 = vmax.xlane.f32.xlu0 %v939
    %v941 = vpop.xlane.xlu0 %940
    %v942 = vsel %vm932, %v919, -inf
    %943 = vmax.xlane.f32.xlu0 %v942
    %v944 = vpop.xlane.xlu0 %943
    %v945 = vsel %vm932, %v920, -inf
    %946 = vmax.xlane.f32.xlu0 %v945
    %v947 = vpop.xlane.xlu0 %946
    %v948 = vsel %vm932, %v921, -inf
    %949 = vmax.xlane.f32.xlu0 %v948
    %v950 = vpop.xlane.xlu0 %949
    %v951 = vsel %vm932, %v922, -inf
    %952 = vmax.xlane.f32.xlu0 %v951
    %v953 = vpop.xlane.xlu0 %952
    %v954 = vsel %vm932, %v923, -inf
    %955 = vmax.xlane.f32.xlu0 %v954
    %v956 = vpop.xlane.xlu0 %955
    %v957 = vsel %vm932, %v924, -inf
    %958 = vmax.xlane.f32.xlu0 %v957
    %v959 = vpop.xlane.xlu0 %958
    %v960 = vsel %vm932, %v925, -inf
    %961 = vmax.xlane.f32.xlu0 %v960
    %v962 = vpop.xlane.xlu0 %961
    %v963 = vsel %vm932, %v926, -inf
    %964 = vmax.xlane.f32.xlu0 %v963
    %v965 = vpop.xlane.xlu0 %964
    %v966 = vsel %vm932, %v927, -inf
    %967 = vmax.xlane.f32.xlu0 %v966
    %v968 = vpop.xlane.xlu0 %967
    %v969 = vsel %vm932, %v928, -inf
    %970 = vmax.xlane.f32.xlu0 %v969
    %v971 = vpop.xlane.xlu0 %970
    %v972 = vsel %vm932, %v929, -inf
    %973 = vmax.xlane.f32.xlu0 %v972
    %v974 = vpop.xlane.xlu0 %973
    %v975 = vsel %vm932, %v930, -inf
    %976 = vmax.xlane.f32.xlu0 %v975
    %v977 = vpop.xlane.xlu0 %976
    %v978 = vsel %vm932, %v931, -inf
    %979 = vmax.xlane.f32.xlu0 %v978
    %v980 = vpop.xlane.xlu0 %979
    %v981 = vsub.f32 %v916, %v935
    %v982 = vsub.f32 %v917, %v938
    %v983 = vsub.f32 %v918, %v941
    %v984 = vsub.f32 %v919, %v944
    %v985 = vsub.f32 %v920, %v947
    %v986 = vsub.f32 %v921, %v950
    %v987 = vsub.f32 %v922, %v953
    %v988 = vsub.f32 %v923, %v956
    %v989 = vsub.f32 %v924, %v959
    %v990 = vsub.f32 %v925, %v962
    %v991 = vsub.f32 %v926, %v965
    %v992 = vsub.f32 %v927, %v968
    %v993 = vsub.f32 %v928, %v971
    %v994 = vsub.f32 %v929, %v974
    %v995 = vsub.f32 %v930, %v977
    %v996 = vsub.f32 %v931, %v980
    %v997 = vmul.f32 %v981, 1.442695
    %v998 = vpow.pop %v997
    %v999 = vmul.f32 %v982, 1.442695
    %v1000 = vpow.pop %v999
    %v1001 = vmul.f32 %v983, 1.442695
    %v1002 = vpow.pop %v1001
    %v1003 = vmul.f32 %v984, 1.442695
    %v1004 = vpow.pop %v1003
    %v1005 = vmul.f32 %v985, 1.442695
    %v1006 = vpow.pop %v1005
    %v1007 = vmul.f32 %v986, 1.442695
    %v1008 = vpow.pop %v1007
    %v1009 = vmul.f32 %v987, 1.442695
    %v1010 = vpow.pop %v1009
    %v1011 = vmul.f32 %v988, 1.442695
    %v1012 = vpow.pop %v1011
    %v1013 = vmul.f32 %v989, 1.442695
    %v1014 = vpow.pop %v1013
    %v1015 = vmul.f32 %v990, 1.442695
    %v1016 = vpow.pop %v1015
    %v1017 = vmul.f32 %v991, 1.442695
    %v1018 = vpow.pop %v1017
    %v1019 = vmul.f32 %v992, 1.442695
    %v1020 = vpow.pop %v1019
    %v1021 = vmul.f32 %v993, 1.442695
    %v1022 = vpow.pop %v1021
    %v1023 = vmul.f32 %v994, 1.442695
    %v1024 = vpow.pop %v1023
    %v1025 = vmul.f32 %v995, 1.442695
    %v1026 = vpow.pop %v1025
    %v1027 = vmul.f32 %v996, 1.442695
    %v1028 = vpow.pop %v1027
    %v1029 = vsel %vm932, %v998, 0.0
    %1030 = vadd.xlane.f32.xlu0 %v1029
    %v1031 = vpop.xlane.xlu0 %1030
    %v1032 = vsel %vm932, %v1000, 0.0
    %1033 = vadd.xlane.f32.xlu0 %v1032
    %v1034 = vpop.xlane.xlu0 %1033
    %v1035 = vsel %vm932, %v1002, 0.0
    %1036 = vadd.xlane.f32.xlu0 %v1035
    %v1037 = vpop.xlane.xlu0 %1036
    %v1038 = vsel %vm932, %v1004, 0.0
    %1039 = vadd.xlane.f32.xlu0 %v1038
    %v1040 = vpop.xlane.xlu0 %1039
    %v1041 = vsel %vm932, %v1006, 0.0
    %1042 = vadd.xlane.f32.xlu0 %v1041
    %v1043 = vpop.xlane.xlu0 %1042
    %v1044 = vsel %vm932, %v1008, 0.0
    %1045 = vadd.xlane.f32.xlu0 %v1044
    %v1046 = vpop.xlane.xlu0 %1045
    %v1047 = vsel %vm932, %v1010, 0.0
    %1048 = vadd.xlane.f32.xlu0 %v1047
    %v1049 = vpop.xlane.xlu0 %1048
    %v1050 = vsel %vm932, %v1012, 0.0
    %1051 = vadd.xlane.f32.xlu0 %v1050
    %v1052 = vpop.xlane.xlu0 %1051
    %v1053 = vsel %vm932, %v1014, 0.0
    %1054 = vadd.xlane.f32.xlu0 %v1053
    %v1055 = vpop.xlane.xlu0 %1054
    %v1056 = vsel %vm932, %v1016, 0.0
    %1057 = vadd.xlane.f32.xlu0 %v1056
    %v1058 = vpop.xlane.xlu0 %1057
    %v1059 = vsel %vm932, %v1018, 0.0
    %1060 = vadd.xlane.f32.xlu0 %v1059
    %v1061 = vpop.xlane.xlu0 %1060
    %v1062 = vsel %vm932, %v1020, 0.0
    %1063 = vadd.xlane.f32.xlu0 %v1062
    %v1064 = vpop.xlane.xlu0 %1063
    %v1065 = vsel %vm932, %v1022, 0.0
    %1066 = vadd.xlane.f32.xlu0 %v1065
    %v1067 = vpop.xlane.xlu0 %1066
    %v1068 = vsel %vm932, %v1024, 0.0
    %1069 = vadd.xlane.f32.xlu0 %v1068
    %v1070 = vpop.xlane.xlu0 %1069
    %v1071 = vsel %vm932, %v1026, 0.0
    %1072 = vadd.xlane.f32.xlu0 %v1071
    %v1073 = vpop.xlane.xlu0 %1072
    %v1074 = vsel %vm932, %v1028, 0.0
    %1075 = vadd.xlane.f32.xlu0 %v1074
    %v1076 = vpop.xlane.xlu0 %1075
    %v1077 = vrcp.pop %v1031
    %v1078 = vrcp.pop %v1034
    %v1079 = vrcp.pop %v1037
    %v1080 = vrcp.pop %v1040
    %v1081 = vrcp.pop %v1043
    %v1082 = vrcp.pop %v1046
    %v1083 = vrcp.pop %v1049
    %v1084 = vrcp.pop %v1052
    %v1085 = vrcp.pop %v1055
    %v1086 = vrcp.pop %v1058
    %v1087 = vrcp.pop %v1061
    %v1088 = vrcp.pop %v1064
    %v1089 = vrcp.pop %v1067
    %v1090 = vrcp.pop %v1070
    %v1091 = vrcp.pop %v1073
    %v1092 = vrcp.pop %v1076
    %v1093 = vmul.f32 %v998, %v1077
    %v1094 = vmul.f32 %v1000, %v1078
    %v1095 = vmul.f32 %v1002, %v1079
    %v1096 = vmul.f32 %v1004, %v1080
    %v1097 = vmul.f32 %v1006, %v1081
    %v1098 = vmul.f32 %v1008, %v1082
    %v1099 = vmul.f32 %v1010, %v1083
    %v1100 = vmul.f32 %v1012, %v1084
    %v1101 = vmul.f32 %v1014, %v1085
    %v1102 = vmul.f32 %v1016, %v1086
    %v1103 = vmul.f32 %v1018, %v1087
    %v1104 = vmul.f32 %v1020, %v1088
    %v1105 = vmul.f32 %v1022, %v1089
    %v1106 = vmul.f32 %v1024, %v1090
    %v1107 = vmul.f32 %v1026, %v1091
    %v1108 = vmul.f32 %v1028, %v1092
    %v1109 = vpack.c.bf16 %v1094, %v1093
    %v1110 = vpack.c.bf16 %v1096, %v1095
    %v1111 = vpack.c.bf16 %v1098, %v1097
    %v1112 = vpack.c.bf16 %v1100, %v1099
    %v1113 = vpack.c.bf16 %v1102, %v1101
    %v1114 = vpack.c.bf16 %v1104, %v1103
    %v1115 = vpack.c.bf16 %v1106, %v1105
    %v1116 = vpack.c.bf16 %v1108, %v1107
    %v1118 = vsel %vm932, %v1109, 0
    %1120 = vmatprep.subr.bf16.mxu0 0
    %1121 = vmatpush1.bf16.msra.mxu0 %v478
    %1122 = vmatprep.subr.bf16.mxu0 0
    %1123 = vmatpush1.bf16.msra.mxu0 0
    %1124 = vmatprep.subr.bf16.mxu0 0
    %1125 = vmatpush1.bf16.msra.mxu0 0
    %1126 = vmatprep.subr.bf16.mxu0 0
    %1127 = vmatpush1.bf16.msra.mxu0 0
    %1128 = vmatprep.subr.bf16.mxu0 0
    %1129 = vmatpush1.bf16.msra.mxu0 0
    %1130 = vmatprep.subr.bf16.mxu0 0
    %1131 = vmatpush1.bf16.msra.mxu0 0
    %1132 = vmatprep.subr.bf16.mxu0 0
    %1133 = vmatpush1.bf16.msra.mxu0 0
    %1134 = vmatprep.subr.bf16.mxu0 0
    %1135 = vmatpush1.bf16.msra.mxu0 0
    %1136 = vmatprep.subr.bf16.mxu0 0
    %1137 = vmatpush1.bf16.msra.mxu0 0
    %1138 = vmatprep.subr.bf16.mxu0 0
    %1139 = vmatpush1.bf16.msra.mxu0 0
    %1140 = vmatprep.subr.bf16.mxu0 0
    %1141 = vmatpush1.bf16.msra.mxu0 0
    %1142 = vmatprep.subr.bf16.mxu0 0
    %1143 = vmatpush1.bf16.msra.mxu0 0
    %1144 = vmatprep.subr.bf16.mxu0 0
    %1145 = vmatpush1.bf16.msra.mxu0 0
    %1146 = vmatprep.subr.bf16.mxu0 0
    %1147 = vmatpush1.bf16.msra.mxu0 0
    %1148 = vmatprep.subr.bf16.mxu0 0
    %1149 = vmatpush1.bf16.msra.mxu0 0
    %1150 = vmatprep.subr.bf16.mxu0 0
    %1151 = vmatpush1.bf16.msra.mxu0 0
    %1152 = vmatprep.mubr.bf16.mxu0 0
    %1153 = vmatmul.mubr.bf16.gmra.mrb[0].mxu0 %v1118
    %v1154 = vpop.f32.mrb[0].mxu0
    %v1155 = vadd.f32 0.0, %v1154
    %v1156 = vpop.f32.mrb[0].mxu0
    %v1157 = vpop.f32.mrb[0].mxu0
    %v1158 = vadd.f32 0.0, %v1157
    %v1159 = vpop.f32.mrb[0].mxu0
    %1160 = vdwg.mxu0
    %v1162 = vsel %vm932, %v1110, 0
    %1164 = vmatprep.subr.bf16.mxu0 0
    %1165 = vmatpush1.bf16.msra.mxu0 %v479
    %1166 = vmatprep.subr.bf16.mxu0 0
    %1167 = vmatpush1.bf16.msra.mxu0 0
    %1168 = vmatprep.subr.bf16.mxu0 0
    %1169 = vmatpush1.bf16.msra.mxu0 0
    %1170 = vmatprep.subr.bf16.mxu0 0
    %1171 = vmatpush1.bf16.msra.mxu0 0
    %1172 = vmatprep.subr.bf16.mxu0 0
    %1173 = vmatpush1.bf16.msra.mxu0 0
    %1174 = vmatprep.subr.bf16.mxu0 0
    %1175 = vmatpush1.bf16.msra.mxu0 0
    %1176 = vmatprep.subr.bf16.mxu0 0
    %1177 = vmatpush1.bf16.msra.mxu0 0
    %1178 = vmatprep.subr.bf16.mxu0 0
    %1179 = vmatpush1.bf16.msra.mxu0 0
    %1180 = vmatprep.subr.bf16.mxu0 0
    %1181 = vmatpush1.bf16.msra.mxu0 0
    %1182 = vmatprep.subr.bf16.mxu0 0
    %1183 = vmatpush1.bf16.msra.mxu0 0
    %1184 = vmatprep.subr.bf16.mxu0 0
    %1185 = vmatpush1.bf16.msra.mxu0 0
    %1186 = vmatprep.subr.bf16.mxu0 0
    %1187 = vmatpush1.bf16.msra.mxu0 0
    %1188 = vmatprep.subr.bf16.mxu0 0
    %1189 = vmatpush1.bf16.msra.mxu0 0
    %1190 = vmatprep.subr.bf16.mxu0 0
    %1191 = vmatpush1.bf16.msra.mxu0 0
    %1192 = vmatprep.subr.bf16.mxu0 0
    %1193 = vmatpush1.bf16.msra.mxu0 0
    %1194 = vmatprep.subr.bf16.mxu0 0
    %1195 = vmatpush1.bf16.msra.mxu0 0
    %1196 = vmatprep.mubr.bf16.mxu0 0
    %1197 = vmatmul.mubr.bf16.gmra.mrb[0].mxu0 %v1162
    %v1198 = vpop.f32.mrb[0].mxu0
    %v1199 = vadd.f32 0.0, %v1198
    %v1200 = vpop.f32.mrb[0].mxu0
    %v1201 = vpop.f32.mrb[0].mxu0
    %v1202 = vadd.f32 0.0, %v1201
    %v1203 = vpop.f32.mrb[0].mxu0
    %1204 = vdwg.mxu0
    %v1206 = vsel %vm932, %v1111, 0
    %1208 = vmatprep.subr.bf16.mxu0 0
    %1209 = vmatpush1.bf16.msra.mxu0 %v511
    %1210 = vmatprep.subr.bf16.mxu0 0
    %1211 = vmatpush1.bf16.msra.mxu0 0
    %1212 = vmatprep.subr.bf16.mxu0 0
    %1213 = vmatpush1.bf16.msra.mxu0 0
    %1214 = vmatprep.subr.bf16.mxu0 0
    %1215 = vmatpush1.bf16.msra.mxu0 0
    %1216 = vmatprep.subr.bf16.mxu0 0
    %1217 = vmatpush1.bf16.msra.mxu0 0
    %1218 = vmatprep.subr.bf16.mxu0 0
    %1219 = vmatpush1.bf16.msra.mxu0 0
    %1220 = vmatprep.subr.bf16.mxu0 0
    %1221 = vmatpush1.bf16.msra.mxu0 0
    %1222 = vmatprep.subr.bf16.mxu0 0
    %1223 = vmatpush1.bf16.msra.mxu0 0
    %1224 = vmatprep.subr.bf16.mxu0 0
    %1225 = vmatpush1.bf16.msra.mxu0 0
    %1226 = vmatprep.subr.bf16.mxu0 0
    %1227 = vmatpush1.bf16.msra.mxu0 0
    %1228 = vmatprep.subr.bf16.mxu0 0
    %1229 = vmatpush1.bf16.msra.mxu0 0
    %1230 = vmatprep.subr.bf16.mxu0 0
    %1231 = vmatpush1.bf16.msra.mxu0 0
    %1232 = vmatprep.subr.bf16.mxu0 0
    %1233 = vmatpush1.bf16.msra.mxu0 0
    %1234 = vmatprep.subr.bf16.mxu0 0
    %1235 = vmatpush1.bf16.msra.mxu0 0
    %1236 = vmatprep.subr.bf16.mxu0 0
    %1237 = vmatpush1.bf16.msra.mxu0 0
    %1238 = vmatprep.subr.bf16.mxu0 0
    %1239 = vmatpush1.bf16.msra.mxu0 0
    %1240 = vmatprep.mubr.bf16.mxu0 0
    %1241 = vmatmul.mubr.bf16.gmra.mrb[0].mxu0 %v1206
    %v1242 = vpop.f32.mrb[0].mxu0
    %v1243 = vadd.f32 0.0, %v1242
    %v1244 = vpop.f32.mrb[0].mxu0
    %v1245 = vpop.f32.mrb[0].mxu0
    %v1246 = vadd.f32 0.0, %v1245
    %v1247 = vpop.f32.mrb[0].mxu0
    %1248 = vdwg.mxu0
    %v1250 = vsel %vm932, %v1112, 0
    %1252 = vmatprep.subr.bf16.mxu0 0
    %1253 = vmatpush1.bf16.msra.mxu0 %v513
    %1254 = vmatprep.subr.bf16.mxu0 0
    %1255 = vmatpush1.bf16.msra.mxu0 0
    %1256 = vmatprep.subr.bf16.mxu0 0
    %1257 = vmatpush1.bf16.msra.mxu0 0
    %1258 = vmatprep.subr.bf16.mxu0 0
    %1259 = vmatpush1.bf16.msra.mxu0 0
    %1260 = vmatprep.subr.bf16.mxu0 0
    %1261 = vmatpush1.bf16.msra.mxu0 0
    %1262 = vmatprep.subr.bf16.mxu0 0
    %1263 = vmatpush1.bf16.msra.mxu0 0
    %1264 = vmatprep.subr.bf16.mxu0 0
    %1265 = vmatpush1.bf16.msra.mxu0 0
    %1266 = vmatprep.subr.bf16.mxu0 0
    %1267 = vmatpush1.bf16.msra.mxu0 0
    %1268 = vmatprep.subr.bf16.mxu0 0
    %1269 = vmatpush1.bf16.msra.mxu0 0
    %1270 = vmatprep.subr.bf16.mxu0 0
    %1271 = vmatpush1.bf16.msra.mxu0 0
    %1272 = vmatprep.subr.bf16.mxu0 0
    %1273 = vmatpush1.bf16.msra.mxu0 0
    %1274 = vmatprep.subr.bf16.mxu0 0
    %1275 = vmatpush1.bf16.msra.mxu0 0
    %1276 = vmatprep.subr.bf16.mxu0 0
    %1277 = vmatpush1.bf16.msra.mxu0 0
    %1278 = vmatprep.subr.bf16.mxu0 0
    %1279 = vmatpush1.bf16.msra.mxu0 0
    %1280 = vmatprep.subr.bf16.mxu0 0
    %1281 = vmatpush1.bf16.msra.mxu0 0
    %1282 = vmatprep.subr.bf16.mxu0 0
    %1283 = vmatpush1.bf16.msra.mxu0 0
    %1284 = vmatprep.mubr.bf16.mxu0 0
    %1285 = vmatmul.mubr.bf16.gmra.mrb[0].mxu0 %v1250
    %v1286 = vpop.f32.mrb[0].mxu0
    %v1287 = vadd.f32 0.0, %v1286
    %v1288 = vpop.f32.mrb[0].mxu0
    %v1289 = vpop.f32.mrb[0].mxu0
    %v1290 = vadd.f32 0.0, %v1289
    %v1291 = vpop.f32.mrb[0].mxu0
    %1292 = vdwg.mxu0
    %v1294 = vsel %vm932, %v1113, 0
    %1296 = vmatprep.subr.bf16.mxu0 0
    %1297 = vmatpush1.bf16.msra.mxu0 %v517
    %1298 = vmatprep.subr.bf16.mxu0 0
    %1299 = vmatpush1.bf16.msra.mxu0 0
    %1300 = vmatprep.subr.bf16.mxu0 0
    %1301 = vmatpush1.bf16.msra.mxu0 0
    %1302 = vmatprep.subr.bf16.mxu0 0
    %1303 = vmatpush1.bf16.msra.mxu0 0
    %1304 = vmatprep.subr.bf16.mxu0 0
    %1305 = vmatpush1.bf16.msra.mxu0 0
    %1306 = vmatprep.subr.bf16.mxu0 0
    %1307 = vmatpush1.bf16.msra.mxu0 0
    %1308 = vmatprep.subr.bf16.mxu0 0
    %1309 = vmatpush1.bf16.msra.mxu0 0
    %1310 = vmatprep.subr.bf16.mxu0 0
    %1311 = vmatpush1.bf16.msra.mxu0 0
    %1312 = vmatprep.subr.bf16.mxu0 0
    %1313 = vmatpush1.bf16.msra.mxu0 0
    %1314 = vmatprep.subr.bf16.mxu0 0
    %1315 = vmatpush1.bf16.msra.mxu0 0
    %1316 = vmatprep.subr.bf16.mxu0 0
    %1317 = vmatpush1.bf16.msra.mxu0 0
    %1318 = vmatprep.subr.bf16.mxu0 0
    %1319 = vmatpush1.bf16.msra.mxu0 0
    %1320 = vmatprep.subr.bf16.mxu0 0
    %1321 = vmatpush1.bf16.msra.mxu0 0
    %1322 = vmatprep.subr.bf16.mxu0 0
    %1323 = vmatpush1.bf16.msra.mxu0 0
    %1324 = vmatprep.subr.bf16.mxu0 0
    %1325 = vmatpush1.bf16.msra.mxu0 0
    %1326 = vmatprep.subr.bf16.mxu0 0
    %1327 = vmatpush1.bf16.msra.mxu0 0
    %1328 = vmatprep.mubr.bf16.mxu0 0
    %1329 = vmatmul.mubr.bf16.gmra.mrb[0].mxu0 %v1294
    %v1330 = vpop.f32.mrb[0].mxu0
    %v1331 = vadd.f32 0.0, %v1330
    %v1332 = vpop.f32.mrb[0].mxu0
    %v1333 = vpop.f32.mrb[0].mxu0
    %v1334 = vadd.f32 0.0, %v1333
    %v1335 = vpop.f32.mrb[0].mxu0
    %1336 = vdwg.mxu0
    %v1338 = vsel %vm932, %v1114, 0
    %1340 = vmatprep.subr.bf16.mxu0 0
    %1341 = vmatpush1.bf16.msra.mxu0 %v519
    %1342 = vmatprep.subr.bf16.mxu0 0
    %1343 = vmatpush1.bf16.msra.mxu0 0
    %1344 = vmatprep.subr.bf16.mxu0 0
    %1345 = vmatpush1.bf16.msra.mxu0 0
    %1346 = vmatprep.subr.bf16.mxu0 0
    %1347 = vmatpush1.bf16.msra.mxu0 0
    %1348 = vmatprep.subr.bf16.mxu0 0
    %1349 = vmatpush1.bf16.msra.mxu0 0
    %1350 = vmatprep.subr.bf16.mxu0 0
    %1351 = vmatpush1.bf16.msra.mxu0 0
    %1352 = vmatprep.subr.bf16.mxu0 0
    %1353 = vmatpush1.bf16.msra.mxu0 0
    %1354 = vmatprep.subr.bf16.mxu0 0
    %1355 = vmatpush1.bf16.msra.mxu0 0
    %1356 = vmatprep.subr.bf16.mxu0 0
    %1357 = vmatpush1.bf16.msra.mxu0 0
    %1358 = vmatprep.subr.bf16.mxu0 0
    %1359 = vmatpush1.bf16.msra.mxu0 0
    %1360 = vmatprep.subr.bf16.mxu0 0
    %1361 = vmatpush1.bf16.msra.mxu0 0
    %1362 = vmatprep.subr.bf16.mxu0 0
    %1363 = vmatpush1.bf16.msra.mxu0 0
    %1364 = vmatprep.subr.bf16.mxu0 0
    %1365 = vmatpush1.bf16.msra.mxu0 0
    %1366 = vmatprep.subr.bf16.mxu0 0
    %1367 = vmatpush1.bf16.msra.mxu0 0
    %1368 = vmatprep.subr.bf16.mxu0 0
    %1369 = vmatpush1.bf16.msra.mxu0 0
    %1370 = vmatprep.subr.bf16.mxu0 0
    %1371 = vmatpush1.bf16.msra.mxu0 0
    %1372 = vmatprep.mubr.bf16.mxu0 0
    %1373 = vmatmul.mubr.bf16.gmra.mrb[0].mxu0 %v1338
    %v1374 = vpop.f32.mrb[0].mxu0
    %v1375 = vadd.f32 0.0, %v1374
    %v1376 = vpop.f32.mrb[0].mxu0
    %v1377 = vpop.f32.mrb[0].mxu0
    %v1378 = vadd.f32 0.0, %v1377
    %v1379 = vpop.f32.mrb[0].mxu0
    %1380 = vdwg.mxu0
    %v1382 = vsel %vm932, %v1115, 0
    %1384 = vmatprep.subr.bf16.mxu0 0
    %1385 = vmatpush1.bf16.msra.mxu0 %v523
    %1386 = vmatprep.subr.bf16.mxu0 0
    %1387 = vmatpush1.bf16.msra.mxu0 0
    %1388 = vmatprep.subr.bf16.mxu0 0
    %1389 = vmatpush1.bf16.msra.mxu0 0
    %1390 = vmatprep.subr.bf16.mxu0 0
    %1391 = vmatpush1.bf16.msra.mxu0 0
    %1392 = vmatprep.subr.bf16.mxu0 0
    %1393 = vmatpush1.bf16.msra.mxu0 0
    %1394 = vmatprep.subr.bf16.mxu0 0
    %1395 = vmatpush1.bf16.msra.mxu0 0
    %1396 = vmatprep.subr.bf16.mxu0 0
    %1397 = vmatpush1.bf16.msra.mxu0 0
    %1398 = vmatprep.subr.bf16.mxu0 0
    %1399 = vmatpush1.bf16.msra.mxu0 0
    %1400 = vmatprep.subr.bf16.mxu0 0
    %1401 = vmatpush1.bf16.msra.mxu0 0
    %1402 = vmatprep.subr.bf16.mxu0 0
    %1403 = vmatpush1.bf16.msra.mxu0 0
    %1404 = vmatprep.subr.bf16.mxu0 0
    %1405 = vmatpush1.bf16.msra.mxu0 0
    %1406 = vmatprep.subr.bf16.mxu0 0
    %1407 = vmatpush1.bf16.msra.mxu0 0
    %1408 = vmatprep.subr.bf16.mxu0 0
    %1409 = vmatpush1.bf16.msra.mxu0 0
    %1410 = vmatprep.subr.bf16.mxu0 0
    %1411 = vmatpush1.bf16.msra.mxu0 0
    %1412 = vmatprep.subr.bf16.mxu0 0
    %1413 = vmatpush1.bf16.msra.mxu0 0
    %1414 = vmatprep.subr.bf16.mxu0 0
    %1415 = vmatpush1.bf16.msra.mxu0 0
    %1416 = vmatprep.mubr.bf16.mxu0 0
    %1417 = vmatmul.mubr.bf16.gmra.mrb[0].mxu0 %v1382
    %v1418 = vpop.f32.mrb[0].mxu0
    %v1419 = vadd.f32 0.0, %v1418
    %v1420 = vpop.f32.mrb[0].mxu0
    %v1421 = vpop.f32.mrb[0].mxu0
    %v1422 = vadd.f32 0.0, %v1421
    %v1423 = vpop.f32.mrb[0].mxu0
    %1424 = vdwg.mxu0
    %v1426 = vsel %vm932, %v1116, 0
    %1428 = vmatprep.subr.bf16.mxu0 0
    %1429 = vmatpush1.bf16.msra.mxu0 %v525
    %1430 = vmatprep.subr.bf16.mxu0 0
    %1431 = vmatpush1.bf16.msra.mxu0 0
    %1432 = vmatprep.subr.bf16.mxu0 0
    %1433 = vmatpush1.bf16.msra.mxu0 0
    %1434 = vmatprep.subr.bf16.mxu0 0
    %1435 = vmatpush1.bf16.msra.mxu0 0
    %1436 = vmatprep.subr.bf16.mxu0 0
    %1437 = vmatpush1.bf16.msra.mxu0 0
    %1438 = vmatprep.subr.bf16.mxu0 0
    %1439 = vmatpush1.bf16.msra.mxu0 0
    %1440 = vmatprep.subr.bf16.mxu0 0
    %1441 = vmatpush1.bf16.msra.mxu0 0
    %1442 = vmatprep.subr.bf16.mxu0 0
    %1443 = vmatpush1.bf16.msra.mxu0 0
    %1444 = vmatprep.subr.bf16.mxu0 0
    %1445 = vmatpush1.bf16.msra.mxu0 0
    %1446 = vmatprep.subr.bf16.mxu0 0
    %1447 = vmatpush1.bf16.msra.mxu0 0
    %1448 = vmatprep.subr.bf16.mxu0 0
    %1449 = vmatpush1.bf16.msra.mxu0 0
    %1450 = vmatprep.subr.bf16.mxu0 0
    %1451 = vmatpush1.bf16.msra.mxu0 0
    %1452 = vmatprep.subr.bf16.mxu0 0
    %1453 = vmatpush1.bf16.msra.mxu0 0
    %1454 = vmatprep.subr.bf16.mxu0 0
    %1455 = vmatpush1.bf16.msra.mxu0 0
    %1456 = vmatprep.subr.bf16.mxu0 0
    %1457 = vmatpush1.bf16.msra.mxu0 0
    %1458 = vmatprep.subr.bf16.mxu0 0
    %1459 = vmatpush1.bf16.msra.mxu0 0
    %1460 = vmatprep.mubr.bf16.mxu0 0
    %1461 = vmatmul.mubr.bf16.gmra.mrb[0].mxu0 %v1426
    %v1462 = vpop.f32.mrb[0].mxu0
    %v1463 = vadd.f32 0.0, %v1462
    %v1464 = vpop.f32.mrb[0].mxu0
    %v1465 = vpop.f32.mrb[0].mxu0
    %v1466 = vadd.f32 0.0, %v1465
    %v1467 = vpop.f32.mrb[0].mxu0
    %1468 = vdwg.mxu0
    %1473 = vrot.lane.b32.xlu0 %v1243, 32
    %v1474 = vpop.permute.xlu0 %1473
    %1475 = vrot.lane.b32.xlu0 %v1246, 32
    %v1476 = vpop.permute.xlu0 %1475
    %1477 = vrot.lane.b32.xlu0 %v1287, 32
    %v1478 = vpop.permute.xlu0 %1477
    %1479 = vrot.lane.b32.xlu0 %v1290, 32
    %v1480 = vpop.permute.xlu0 %1479
    %1489 = vrot.lane.b32.xlu0 %v1331, 64
    %v1490 = vpop.permute.xlu0 %1489
    %1491 = vrot.lane.b32.xlu0 %v1334, 64
    %v1492 = vpop.permute.xlu0 %1491
    %1493 = vrot.lane.b32.xlu0 %v1375, 64
    %v1494 = vpop.permute.xlu0 %1493
    %1495 = vrot.lane.b32.xlu0 %v1378, 64
    %v1496 = vpop.permute.xlu0 %1495
    %1505 = vrot.lane.b32.xlu0 %v1419, 96
    %v1506 = vpop.permute.xlu0 %1505
    %1507 = vrot.lane.b32.xlu0 %v1422, 96
    %v1508 = vpop.permute.xlu0 %1507
    %1509 = vrot.lane.b32.xlu0 %v1463, 96
    %v1510 = vpop.permute.xlu0 %1509
    %1511 = vrot.lane.b32.xlu0 %v1466, 96
    %v1512 = vpop.permute.xlu0 %1511
    %v1517 = vsel %vm535, %v1155, %v1474
    %v1518 = vsel %vm535, %v1158, %v1476
    %v1519 = vsel %vm535, %v1199, %v1478
    %v1520 = vsel %vm535, %v1202, %v1480
    %vm1521 = vcmask 523264
    %v1522 = vsel %vm1521, %v1517, %v1490
    %v1523 = vsel %vm1521, %v1518, %v1492
    %v1524 = vsel %vm1521, %v1519, %v1494
    %v1525 = vsel %vm1521, %v1520, %v1496
    %vm1526 = vcmask 785408
    %v1527 = vsel %vm1526, %v1522, %v1506
    %v1528 = vsel %vm1526, %v1523, %v1508
    %v1529 = vsel %vm1526, %v1524, %v1510
    %v1530 = vsel %vm1526, %v1525, %v1512
    %v1531 = vpack.c.bf16 %v1528, %v1527
    %v1532 = vpack.c.bf16 %v1530, %v1529
    %v1533 = vld [vmem:[#allocation7] sm:$0xf]
    %v1534 = vld [vmem:[#allocation7 + $0x4] sm:$0xf]
    %v1535 = vld [vmem:[#allocation7 + $0x8] sm:$0xf]
    %v1536 = vld [vmem:[#allocation7 + $0xc] sm:$0xf]
    %v1537 = vld [vmem:[#allocation7 + $0x10] sm:$0xf]
    %v1538 = vld [vmem:[#allocation7 + $0x14] sm:$0xf]
    %v1539 = vld [vmem:[#allocation7 + $0x18] sm:$0xf]
    %v1540 = vld [vmem:[#allocation7 + $0x1c] sm:$0xf]
    %v1541 = vld [vmem:[#allocation7 + $0x20] sm:$0xf]
    %v1542 = vld [vmem:[#allocation7 + $0x24] sm:$0xf]
    %v1543 = vld [vmem:[#allocation7 + $0x28] sm:$0xf]
    %v1544 = vld [vmem:[#allocation7 + $0x2c] sm:$0xf]
    %v1545 = vld [vmem:[#allocation7 + $0x30] sm:$0xf]
    %v1546 = vld [vmem:[#allocation7 + $0x34] sm:$0xf]
    %v1547 = vld [vmem:[#allocation7 + $0x38] sm:$0xf]
    %v1548 = vld [vmem:[#allocation7 + $0x3c] sm:$0xf]
    %v1549 = vld [vmem:[%s5] sm:$0x1]
    %v1551 = vlaneseq
    %v1552 = vshrl.u32 %v1551, 7
    %v1553 = vsub.s32 0, %v1552
    %v1554 = vrot.slane %v1549, %v1553
    %v1572 = vunpack.c.l.b16 %v1533
    %v1573 = vunpack.c.l.b16 %v1534
    %v1574 = vunpack.c.l.b16 %v1535
    %v1575 = vunpack.c.l.b16 %v1536
    %v1576 = vunpack.c.l.b16 %v1537
    %v1577 = vunpack.c.l.b16 %v1538
    %v1578 = vunpack.c.l.b16 %v1539
    %v1579 = vunpack.c.l.b16 %v1540
    %v1580 = vunpack.c.l.b16 %v1541
    %v1581 = vunpack.c.l.b16 %v1542
    %v1582 = vunpack.c.l.b16 %v1543
    %v1583 = vunpack.c.l.b16 %v1544
    %v1584 = vunpack.c.l.b16 %v1545
    %v1585 = vunpack.c.l.b16 %v1546
    %v1586 = vunpack.c.l.b16 %v1547
    %v1587 = vunpack.c.l.b16 %v1548
    %v1588 = vpack.c.b16 %v1573, %v1572
    %v1589 = vpack.c.b16 %v1575, %v1574
    %v1590 = vpack.c.b16 %v1577, %v1576
    %v1591 = vpack.c.b16 %v1579, %v1578
    %v1592 = vpack.c.b16 %v1581, %v1580
    %v1593 = vpack.c.b16 %v1583, %v1582
    %v1594 = vpack.c.b16 %v1585, %v1584
    %v1595 = vpack.c.b16 %v1587, %v1586
    %1604 = vmatprep.subr.bf16.mxu0 0
    %1605 = vmatpush1.bf16.msra.mxu0 %v1588
    %1606 = vmatprep.subr.bf16.mxu0 0
    %1607 = vmatpush1.bf16.msra.mxu0 %v1589
    %1608 = vmatprep.subr.bf16.mxu0 0
    %1609 = vmatpush1.bf16.msra.mxu0 %v1590
    %1610 = vmatprep.subr.bf16.mxu0 0
    %1611 = vmatpush1.bf16.msra.mxu0 %v1591
    %1612 = vmatprep.subr.bf16.mxu0 0
    %1613 = vmatpush1.bf16.msra.mxu0 %v1592
    %1614 = vmatprep.subr.bf16.mxu0 0
    %1615 = vmatpush1.bf16.msra.mxu0 %v1593
    %1616 = vmatprep.subr.bf16.mxu0 0
    %1617 = vmatpush1.bf16.msra.mxu0 %v1594
    %1618 = vmatprep.subr.bf16.mxu0 0
    %1619 = vmatpush1.bf16.msra.mxu0 %v1595
    %1620 = vmatprep.subr.bf16.mxu0 0
    %1621 = vmatpush1.bf16.msra.mxu0 0
    %1622 = vmatprep.subr.bf16.mxu0 0
    %1623 = vmatpush1.bf16.msra.mxu0 0
    %1624 = vmatprep.subr.bf16.mxu0 0
    %1625 = vmatpush1.bf16.msra.mxu0 0
    %1626 = vmatprep.subr.bf16.mxu0 0
    %1627 = vmatpush1.bf16.msra.mxu0 0
    %1628 = vmatprep.subr.bf16.mxu0 0
    %1629 = vmatpush1.bf16.msra.mxu0 0
    %1630 = vmatprep.subr.bf16.mxu0 0
    %1631 = vmatpush1.bf16.msra.mxu0 0
    %1632 = vmatprep.subr.bf16.mxu0 0
    %1633 = vmatpush1.bf16.msra.mxu0 0
    %1634 = vmatprep.subr.bf16.mxu0 0
    %1635 = vmatpush1.bf16.msra.mxu0 0
    %1636 = vmatprep.mubr.bf16.mxu0 0
    %1637 = vmatmul.mubr.bf16.gmra.mrb[0].mxu0 %v1531
    %v1638 = vpop.f32.mrb[0].mxu0
    %v1639 = vadd.f32 %v1554, %v1638
    %v1640 = vpop.f32.mrb[0].mxu0
    %v1641 = vpop.f32.mrb[0].mxu0
    %v1642 = vadd.f32 %v1554, %v1641
    %v1643 = vpop.f32.mrb[0].mxu0
    %1644 = vmatprep.mubr.bf16.mxu0 0
    %1645 = vmatmul.mubr.bf16.gmra.mrb[0].mxu0 %v1532
    %v1646 = vpop.f32.mrb[0].mxu0
    %v1647 = vadd.f32 %v1554, %v1646
    %v1648 = vpop.f32.mrb[0].mxu0
    %v1649 = vpop.f32.mrb[0].mxu0
    %v1650 = vadd.f32 %v1554, %v1649
    %v1651 = vpop.f32.mrb[0].mxu0
    %1652 = vdwg.mxu0
    %v1653 = vadd.f32 %v123, %v1639
    %v1654 = vadd.f32 %v124, %v1642
    %v1655 = vadd.f32 %v125, %v1647
    %v1656 = vadd.f32 %v126, %v1650
    %v1657 = vld [vmem:[%s6] sm:$0x1]
    %v1658 = vld [vmem:[%s7] sm:$0x1]
    %1659 = vadd.xlane.f32.xlu0 %v1653
    %v1660 = vpop.xlane.xlu0 %1659
    %1661 = vadd.xlane.f32.xlu0 %v1654
    %v1662 = vpop.xlane.xlu0 %1661
    %1663 = vadd.xlane.f32.xlu0 %v1655
    %v1664 = vpop.xlane.xlu0 %1663
    %1665 = vadd.xlane.f32.xlu0 %v1656
    %v1666 = vpop.xlane.xlu0 %1665
    %v1667 = vmul.f32 %v1660, %v137
    %v1668 = vmul.f32 %v1662, %v137
    %v1669 = vmul.f32 %v1664, %v137
    %v1670 = vmul.f32 %v1666, %v137
    %v1671 = vmul.f32 %v1653, %v1653
    %v1672 = vmul.f32 %v1654, %v1654
    %v1673 = vmul.f32 %v1655, %v1655
    %v1674 = vmul.f32 %v1656, %v1656
    %1675 = vadd.xlane.f32.xlu0 %v1671
    %v1676 = vpop.xlane.xlu0 %1675
    %1677 = vadd.xlane.f32.xlu0 %v1672
    %v1678 = vpop.xlane.xlu0 %1677
    %1679 = vadd.xlane.f32.xlu0 %v1673
    %v1680 = vpop.xlane.xlu0 %1679
    %1681 = vadd.xlane.f32.xlu0 %v1674
    %v1682 = vpop.xlane.xlu0 %1681
    %v1683 = vmul.f32 %v1676, %v137
    %v1684 = vmul.f32 %v1678, %v137
    %v1685 = vmul.f32 %v1680, %v137
    %v1686 = vmul.f32 %v1682, %v137
    %v1687 = vmul.f32 %v1667, %v1667
    %v1688 = vmul.f32 %v1668, %v1668
    %v1689 = vmul.f32 %v1669, %v1669
    %v1690 = vmul.f32 %v1670, %v1670
    %v1691 = vsub.f32 %v1683, %v1687
    %v1692 = vsub.f32 %v1684, %v1688
    %v1693 = vsub.f32 %v1685, %v1689
    %v1694 = vsub.f32 %v1686, %v1690
    %v1695 = vmax.f32 %v1691, 0.0
    %v1696 = vmax.f32 %v1692, 0.0
    %v1697 = vmax.f32 %v1693, 0.0
    %v1698 = vmax.f32 %v1694, 0.0
    %v1699 = vsub.f32 %v1653, %v1667
    %v1700 = vsub.f32 %v1654, %v1668
    %v1701 = vsub.f32 %v1655, %v1669
    %v1702 = vsub.f32 %v1656, %v1670
    %v1703 = vadd.f32 %v1695, 1e-05
    %v1704 = vadd.f32 %v1696, 1e-05
    %v1705 = vadd.f32 %v1697, 1e-05
    %v1706 = vadd.f32 %v1698, 1e-05
    %v1707 = vrsqrt.pop %v1703
    %v1708 = vrsqrt.pop %v1704
    %v1709 = vrsqrt.pop %v1705
    %v1710 = vrsqrt.pop %v1706
    %v1711 = vmul.f32 %v1699, %v1707
    %v1712 = vmul.f32 %v1700, %v1708
    %v1713 = vmul.f32 %v1701, %v1709
    %v1714 = vmul.f32 %v1702, %v1710
    %v1716 = vlaneseq
    %v1717 = vshrl.u32 %v1716, 7
    %v1718 = vsub.s32 0, %v1717
    %v1719 = vrot.slane %v1657, %v1718
    %v1721 = vmul.f32 %v1711, %v1719
    %v1722 = vmul.f32 %v1712, %v1719
    %v1723 = vmul.f32 %v1713, %v1719
    %v1724 = vmul.f32 %v1714, %v1719
    %v1726 = vlaneseq
    %v1727 = vshrl.u32 %v1726, 7
    %v1728 = vsub.s32 0, %v1727
    %v1729 = vrot.slane %v1658, %v1728
    %v1731 = vadd.f32 %v1721, %v1729
    %v1732 = vadd.f32 %v1722, %v1729
    %v1733 = vadd.f32 %v1723, %v1729
    %v1734 = vadd.f32 %v1724, %v1729
    %v1735 = vpack.c.bf16 %v1732, %v1731
    %v1736 = vpack.c.bf16 %v1734, %v1733
    %v1737 = vld [vmem:[#allocation8] sm:$0xff]
    %v1738 = vld [vmem:[#allocation8 + $0x8] sm:$0xff]
    %v1739 = vld [vmem:[#allocation8 + $0x10] sm:$0xff]
    %v1740 = vld [vmem:[#allocation8 + $0x18] sm:$0xff]
    %v1741 = vld [vmem:[#allocation8 + $0x20] sm:$0xff]
    %v1742 = vld [vmem:[#allocation8 + $0x28] sm:$0xff]
    %v1743 = vld [vmem:[#allocation8 + $0x30] sm:$0xff]
    %v1744 = vld [vmem:[#allocation8 + $0x38] sm:$0xff]
    %v1745 = vld [vmem:[#allocation8 + $0x40] sm:$0xff]
    %v1746 = vld [vmem:[#allocation8 + $0x48] sm:$0xff]
    %v1747 = vld [vmem:[#allocation8 + $0x50] sm:$0xff]
    %v1748 = vld [vmem:[#allocation8 + $0x58] sm:$0xff]
    %v1749 = vld [vmem:[#allocation8 + $0x60] sm:$0xff]
    %v1750 = vld [vmem:[#allocation8 + $0x68] sm:$0xff]
    %v1751 = vld [vmem:[#allocation8 + $0x70] sm:$0xff]
    %v1752 = vld [vmem:[#allocation8 + $0x78] sm:$0xff]
    %v1753 = vld [vmem:[#allocation8 + $0x80] sm:$0xff]
    %v1754 = vld [vmem:[#allocation8 + $0x88] sm:$0xff]
    %v1755 = vld [vmem:[#allocation8 + $0x90] sm:$0xff]
    %v1756 = vld [vmem:[#allocation8 + $0x98] sm:$0xff]
    %v1757 = vld [vmem:[#allocation8 + $0xa0] sm:$0xff]
    %v1758 = vld [vmem:[#allocation8 + $0xa8] sm:$0xff]
    %v1759 = vld [vmem:[#allocation8 + $0xb0] sm:$0xff]
    %v1760 = vld [vmem:[#allocation8 + $0xb8] sm:$0xff]
    %v1761 = vld [vmem:[#allocation8 + $0xc0] sm:$0xff]
    %v1762 = vld [vmem:[#allocation8 + $0xc8] sm:$0xff]
    %v1763 = vld [vmem:[#allocation8 + $0xd0] sm:$0xff]
    %v1764 = vld [vmem:[#allocation8 + $0xd8] sm:$0xff]
    %v1765 = vld [vmem:[#allocation8 + $0xe0] sm:$0xff]
    %v1766 = vld [vmem:[#allocation8 + $0xe8] sm:$0xff]
    %v1767 = vld [vmem:[#allocation8 + $0xf0] sm:$0xff]
    %v1768 = vld [vmem:[#allocation8 + $0xf8] sm:$0xff]
    %v1769 = vld [vmem:[#allocation10] sm:$0xf]
    %v1771 = vlaneseq
    %v1772 = vshrl.u32 %v1771, 7
    %v1773 = vsub.s32 0, %v1772
    %v1774 = vrot.slane %v1769, %v1773
    %v1775 = vlaneseq
    %v1776 = vshrl.u32 %v1775, 7
    %v1777 = vsub.s32 1, %v1776
    %v1778 = vrot.slane %v1769, %v1777
    %v1779 = vlaneseq
    %v1780 = vshrl.u32 %v1779, 7
    %v1781 = vsub.s32 2, %v1780
    %v1782 = vrot.slane %v1769, %v1781
    %v1783 = vlaneseq
    %v1784 = vshrl.u32 %v1783, 7
    %v1785 = vsub.s32 3, %v1784
    %v1786 = vrot.slane %v1769, %v1785
    %v1823 = vunpack.c.l.b16 %v1737
    %v1824 = vunpack.c.h.b16 %v1737
    %v1825 = vunpack.c.l.b16 %v1738
    %v1826 = vunpack.c.h.b16 %v1738
    %v1827 = vunpack.c.l.b16 %v1739
    %v1828 = vunpack.c.h.b16 %v1739
    %v1829 = vunpack.c.l.b16 %v1740
    %v1830 = vunpack.c.h.b16 %v1740
    %v1831 = vunpack.c.l.b16 %v1741
    %v1832 = vunpack.c.h.b16 %v1741
    %v1833 = vunpack.c.l.b16 %v1742
    %v1834 = vunpack.c.h.b16 %v1742
    %v1835 = vunpack.c.l.b16 %v1743
    %v1836 = vunpack.c.h.b16 %v1743
    %v1837 = vunpack.c.l.b16 %v1744
    %v1838 = vunpack.c.h.b16 %v1744
    %v1839 = vunpack.c.l.b16 %v1745
    %v1840 = vunpack.c.h.b16 %v1745
    %v1841 = vunpack.c.l.b16 %v1746
    %v1842 = vunpack.c.h.b16 %v1746
    %v1843 = vunpack.c.l.b16 %v1747
    %v1844 = vunpack.c.h.b16 %v1747
    %v1845 = vunpack.c.l.b16 %v1748
    %v1846 = vunpack.c.h.b16 %v1748
    %v1847 = vunpack.c.l.b16 %v1749
    %v1848 = vunpack.c.h.b16 %v1749
    %v1849 = vunpack.c.l.b16 %v1750
    %v1850 = vunpack.c.h.b16 %v1750
    %v1851 = vunpack.c.l.b16 %v1751
    %v1852 = vunpack.c.h.b16 %v1751
    %v1853 = vunpack.c.l.b16 %v1752
    %v1854 = vunpack.c.h.b16 %v1752
    %v1855 = vunpack.c.l.b16 %v1753
    %v1856 = vunpack.c.h.b16 %v1753
    %v1857 = vunpack.c.l.b16 %v1754
    %v1858 = vunpack.c.h.b16 %v1754
    %v1859 = vunpack.c.l.b16 %v1755
    %v1860 = vunpack.c.h.b16 %v1755
    %v1861 = vunpack.c.l.b16 %v1756
    %v1862 = vunpack.c.h.b16 %v1756
    %v1863 = vunpack.c.l.b16 %v1757
    %v1864 = vunpack.c.h.b16 %v1757
    %v1865 = vunpack.c.l.b16 %v1758
    %v1866 = vunpack.c.h.b16 %v1758
    %v1867 = vunpack.c.l.b16 %v1759
    %v1868 = vunpack.c.h.b16 %v1759
    %v1869 = vunpack.c.l.b16 %v1760
    %v1870 = vunpack.c.h.b16 %v1760
    %v1871 = vunpack.c.l.b16 %v1761
    %v1872 = vunpack.c.h.b16 %v1761
    %v1873 = vunpack.c.l.b16 %v1762
    %v1874 = vunpack.c.h.b16 %v1762
    %v1875 = vunpack.c.l.b16 %v1763
    %v1876 = vunpack.c.h.b16 %v1763
    %v1877 = vunpack.c.l.b16 %v1764
    %v1878 = vunpack.c.h.b16 %v1764
    %v1879 = vunpack.c.l.b16 %v1765
    %v1880 = vunpack.c.h.b16 %v1765
    %v1881 = vunpack.c.l.b16 %v1766
    %v1882 = vunpack.c.h.b16 %v1766
    %v1883 = vunpack.c.l.b16 %v1767
    %v1884 = vunpack.c.h.b16 %v1767
    %v1885 = vunpack.c.l.b16 %v1768
    %v1886 = vunpack.c.h.b16 %v1768
    %v1887 = vpack.c.b16 %v1827, %v1823
    %v1888 = vpack.c.b16 %v1828, %v1824
    %v1889 = vpack.c.b16 %v1829, %v1825
    %v1890 = vpack.c.b16 %v1830, %v1826
    %v1891 = vpack.c.b16 %v1835, %v1831
    %v1892 = vpack.c.b16 %v1836, %v1832
    %v1893 = vpack.c.b16 %v1837, %v1833
    %v1894 = vpack.c.b16 %v1838, %v1834
    %v1895 = vpack.c.b16 %v1843, %v1839
    %v1896 = vpack.c.b16 %v1844, %v1840
    %v1897 = vpack.c.b16 %v1845, %v1841
    %v1898 = vpack.c.b16 %v1846, %v1842
    %v1899 = vpack.c.b16 %v1851, %v1847
    %v1900 = vpack.c.b16 %v1852, %v1848
    %v1901 = vpack.c.b16 %v1853, %v1849
    %v1902 = vpack.c.b16 %v1854, %v1850
    %v1903 = vpack.c.b16 %v1859, %v1855
    %v1904 = vpack.c.b16 %v1860, %v1856
    %v1905 = vpack.c.b16 %v1861, %v1857
    %v1906 = vpack.c.b16 %v1862, %v1858
    %v1907 = vpack.c.b16 %v1867, %v1863
    %v1908 = vpack.c.b16 %v1868, %v1864
    %v1909 = vpack.c.b16 %v1869, %v1865
    %v1910 = vpack.c.b16 %v1870, %v1866
    %v1911 = vpack.c.b16 %v1875, %v1871
    %v1912 = vpack.c.b16 %v1876, %v1872
    %v1913 = vpack.c.b16 %v1877, %v1873
    %v1914 = vpack.c.b16 %v1878, %v1874
    %v1915 = vpack.c.b16 %v1883, %v1879
    %v1916 = vpack.c.b16 %v1884, %v1880
    %v1917 = vpack.c.b16 %v1885, %v1881
    %v1918 = vpack.c.b16 %v1886, %v1882
    %1951 = vmatprep.subr.bf16.mxu0 %v1888
    %1952 = vmatpush1.bf16.msra.mxu0 %v1887
    %1953 = vmatprep.subr.bf16.mxu0 %v1892
    %1954 = vmatpush1.bf16.msra.mxu0 %v1891
    %1955 = vmatprep.subr.bf16.mxu0 %v1896
    %1956 = vmatpush1.bf16.msra.mxu0 %v1895
    %1957 = vmatprep.subr.bf16.mxu0 %v1900
    %1958 = vmatpush1.bf16.msra.mxu0 %v1899
    %1959 = vmatprep.subr.bf16.mxu0 %v1904
    %1960 = vmatpush1.bf16.msra.mxu0 %v1903
    %1961 = vmatprep.subr.bf16.mxu0 %v1908
    %1962 = vmatpush1.bf16.msra.mxu0 %v1907
    %1963 = vmatprep.subr.bf16.mxu0 %v1912
    %1964 = vmatpush1.bf16.msra.mxu0 %v1911
    %1965 = vmatprep.subr.bf16.mxu0 %v1916
    %1966 = vmatpush1.bf16.msra.mxu0 %v1915
    %1967 = vmatprep.subr.bf16.mxu0 0
    %1968 = vmatpush1.bf16.msra.mxu0 0
    %1969 = vmatprep.subr.bf16.mxu0 0
    %1970 = vmatpush1.bf16.msra.mxu0 0
    %1971 = vmatprep.subr.bf16.mxu0 0
    %1972 = vmatpush1.bf16.msra.mxu0 0
    %1973 = vmatprep.subr.bf16.mxu0 0
    %1974 = vmatpush1.bf16.msra.mxu0 0
    %1975 = vmatprep.subr.bf16.mxu0 0
    %1976 = vmatpush1.bf16.msra.mxu0 0
    %1977 = vmatprep.subr.bf16.mxu0 0
    %1978 = vmatpush1.bf16.msra.mxu0 0
    %1979 = vmatprep.subr.bf16.mxu0 0
    %1980 = vmatpush1.bf16.msra.mxu0 0
    %1981 = vmatprep.subr.bf16.mxu0 0
    %1982 = vmatpush1.bf16.msra.mxu0 0
    %1983 = vmatprep.mubr.bf16.mxu0 0
    %1984 = vmatmul.mubr.bf16.gmra.mrb[0].mxu0 %v1735
    %v1985 = vpop.f32.mrb[0].mxu0
    %v1986 = vadd.f32 %v1774, %v1985
    %v1987 = vpop.f32.mrb[0].mxu0
    %v1988 = vadd.f32 %v1778, %v1987
    %v1989 = vpop.f32.mrb[0].mxu0
    %v1990 = vadd.f32 %v1774, %v1989
    %v1991 = vpop.f32.mrb[0].mxu0
    %v1992 = vadd.f32 %v1778, %v1991
    %1993 = vmatprep.mubr.bf16.mxu0 0
    %1994 = vmatmul.mubr.bf16.gmra.mrb[0].mxu0 %v1736
    %v1995 = vpop.f32.mrb[0].mxu0
    %v1996 = vadd.f32 %v1774, %v1995
    %v1997 = vpop.f32.mrb[0].mxu0
    %v1998 = vadd.f32 %v1778, %v1997
    %v1999 = vpop.f32.mrb[0].mxu0
    %v2000 = vadd.f32 %v1774, %v1999
    %v2001 = vpop.f32.mrb[0].mxu0
    %v2002 = vadd.f32 %v1778, %v2001
    %2003 = vdwg.mxu0
    %2004 = vmatprep.subr.bf16.mxu0 %v1890
    %2005 = vmatpush1.bf16.msra.mxu0 %v1889
    %2006 = vmatprep.subr.bf16.mxu0 %v1894
    %2007 = vmatpush1.bf16.msra.mxu0 %v1893
    %2008 = vmatprep.subr.bf16.mxu0 %v1898
    %2009 = vmatpush1.bf16.msra.mxu0 %v1897
    %2010 = vmatprep.subr.bf16.mxu0 %v1902
    %2011 = vmatpush1.bf16.msra.mxu0 %v1901
    %2012 = vmatprep.subr.bf16.mxu0 %v1906
    %2013 = vmatpush1.bf16.msra.mxu0 %v1905
    %2014 = vmatprep.subr.bf16.mxu0 %v1910
    %2015 = vmatpush1.bf16.msra.mxu0 %v1909
    %2016 = vmatprep.subr.bf16.mxu0 %v1914
    %2017 = vmatpush1.bf16.msra.mxu0 %v1913
    %2018 = vmatprep.subr.bf16.mxu0 %v1918
    %2019 = vmatpush1.bf16.msra.mxu0 %v1917
    %2020 = vmatprep.subr.bf16.mxu0 0
    %2021 = vmatpush1.bf16.msra.mxu0 0
    %2022 = vmatprep.subr.bf16.mxu0 0
    %2023 = vmatpush1.bf16.msra.mxu0 0
    %2024 = vmatprep.subr.bf16.mxu0 0
    %2025 = vmatpush1.bf16.msra.mxu0 0
    %2026 = vmatprep.subr.bf16.mxu0 0
    %2027 = vmatpush1.bf16.msra.mxu0 0
    %2028 = vmatprep.subr.bf16.mxu0 0
    %2029 = vmatpush1.bf16.msra.mxu0 0
    %2030 = vmatprep.subr.bf16.mxu0 0
    %2031 = vmatpush1.bf16.msra.mxu0 0
    %2032 = vmatprep.subr.bf16.mxu0 0
    %2033 = vmatpush1.bf16.msra.mxu0 0
    %2034 = vmatprep.subr.bf16.mxu0 0
    %2035 = vmatpush1.bf16.msra.mxu0 0
    %2036 = vmatprep.mubr.bf16.mxu0 0
    %2037 = vmatmul.mubr.bf16.gmra.mrb[0].mxu0 %v1735
    %v2038 = vpop.f32.mrb[0].mxu0
    %v2039 = vadd.f32 %v1782, %v2038
    %v2040 = vpop.f32.mrb[0].mxu0
    %v2041 = vadd.f32 %v1786, %v2040
    %v2042 = vpop.f32.mrb[0].mxu0
    %v2043 = vadd.f32 %v1782, %v2042
    %v2044 = vpop.f32.mrb[0].mxu0
    %v2045 = vadd.f32 %v1786, %v2044
    %2046 = vmatprep.mubr.bf16.mxu0 0
    %2047 = vmatmul.mubr.bf16.gmra.mrb[0].mxu0 %v1736
    %v2048 = vpop.f32.mrb[0].mxu0
    %v2049 = vadd.f32 %v1782, %v2048
    %v2050 = vpop.f32.mrb[0].mxu0
    %v2051 = vadd.f32 %v1786, %v2050
    %v2052 = vpop.f32.mrb[0].mxu0
    %v2053 = vadd.f32 %v1782, %v2052
    %v2054 = vpop.f32.mrb[0].mxu0
    %v2055 = vadd.f32 %v1786, %v2054
    %2056 = vdwg.mxu0
    %v2057 = vmax.f32 %v1986, 0.0
    %v2058 = vmax.f32 %v1988, 0.0
    %v2059 = vmax.f32 %v2039, 0.0
    %v2060 = vmax.f32 %v2041, 0.0
    %v2061 = vmax.f32 %v1990, 0.0
    %v2062 = vmax.f32 %v1992, 0.0
    %v2063 = vmax.f32 %v2043, 0.0
    %v2064 = vmax.f32 %v2045, 0.0
    %v2065 = vmax.f32 %v1996, 0.0
    %v2066 = vmax.f32 %v1998, 0.0
    %v2067 = vmax.f32 %v2049, 0.0
    %v2068 = vmax.f32 %v2051, 0.0
    %v2069 = vmax.f32 %v2000, 0.0
    %v2070 = vmax.f32 %v2002, 0.0
    %v2071 = vmax.f32 %v2053, 0.0
    %v2072 = vmax.f32 %v2055, 0.0
    %v2073 = vpack.c.bf16 %v2061, %v2057
    %v2074 = vpack.c.bf16 %v2062, %v2058
    %v2075 = vpack.c.bf16 %v2063, %v2059
    %v2076 = vpack.c.bf16 %v2064, %v2060
    %v2077 = vpack.c.bf16 %v2069, %v2065
    %v2078 = vpack.c.bf16 %v2070, %v2066
    %v2079 = vpack.c.bf16 %v2071, %v2067
    %v2080 = vpack.c.bf16 %v2072, %v2068
    %v2081 = vld [vmem:[#allocation11] sm:$0xf]
    %v2082 = vld [vmem:[#allocation11 + $0x4] sm:$0xf]
    %v2083 = vld [vmem:[#allocation11 + $0x8] sm:$0xf]
    %v2084 = vld [vmem:[#allocation11 + $0xc] sm:$0xf]
    %v2085 = vld [vmem:[#allocation11 + $0x10] sm:$0xf]
    %v2086 = vld [vmem:[#allocation11 + $0x14] sm:$0xf]
    %v2087 = vld [vmem:[#allocation11 + $0x18] sm:$0xf]
    %v2088 = vld [vmem:[#allocation11 + $0x1c] sm:$0xf]
    %v2089 = vld [vmem:[#allocation11 + $0x20] sm:$0xf]
    %v2090 = vld [vmem:[#allocation11 + $0x24] sm:$0xf]
    %v2091 = vld [vmem:[#allocation11 + $0x28] sm:$0xf]
    %v2092 = vld [vmem:[#allocation11 + $0x2c] sm:$0xf]
    %v2093 = vld [vmem:[#allocation11 + $0x30] sm:$0xf]
    %v2094 = vld [vmem:[#allocation11 + $0x34] sm:$0xf]
    %v2095 = vld [vmem:[#allocation11 + $0x38] sm:$0xf]
    %v2096 = vld [vmem:[#allocation11 + $0x3c] sm:$0xf]
    %v2097 = vld [vmem:[#allocation11 + $0x40] sm:$0xf]
    %v2098 = vld [vmem:[#allocation11 + $0x44] sm:$0xf]
    %v2099 = vld [vmem:[#allocation11 + $0x48] sm:$0xf]
    %v2100 = vld [vmem:[#allocation11 + $0x4c] sm:$0xf]
    %v2101 = vld [vmem:[#allocation11 + $0x50] sm:$0xf]
    %v2102 = vld [vmem:[#allocation11 + $0x54] sm:$0xf]
    %v2103 = vld [vmem:[#allocation11 + $0x58] sm:$0xf]
    %v2104 = vld [vmem:[#allocation11 + $0x5c] sm:$0xf]
    %v2105 = vld [vmem:[#allocation11 + $0x60] sm:$0xf]
    %v2106 = vld [vmem:[#allocation11 + $0x64] sm:$0xf]
    %v2107 = vld [vmem:[#allocation11 + $0x68] sm:$0xf]
    %v2108 = vld [vmem:[#allocation11 + $0x6c] sm:$0xf]
    %v2109 = vld [vmem:[#allocation11 + $0x70] sm:$0xf]
    %v2110 = vld [vmem:[#allocation11 + $0x74] sm:$0xf]
    %v2111 = vld [vmem:[#allocation11 + $0x78] sm:$0xf]
    %v2112 = vld [vmem:[#allocation11 + $0x7c] sm:$0xf]
    %v2113 = vld [vmem:[#allocation11 + $0x80] sm:$0xf]
    %v2114 = vld [vmem:[#allocation11 + $0x84] sm:$0xf]
    %v2115 = vld [vmem:[#allocation11 + $0x88] sm:$0xf]
    %v2116 = vld [vmem:[#allocation11 + $0x8c] sm:$0xf]
    %v2117 = vld [vmem:[#allocation11 + $0x90] sm:$0xf]
    %v2118 = vld [vmem:[#allocation11 + $0x94] sm:$0xf]
    %v2119 = vld [vmem:[#allocation11 + $0x98] sm:$0xf]
    %v2120 = vld [vmem:[#allocation11 + $0x9c] sm:$0xf]
    %v2121 = vld [vmem:[#allocation11 + $0xa0] sm:$0xf]
    %v2122 = vld [vmem:[#allocation11 + $0xa4] sm:$0xf]
    %v2123 = vld [vmem:[#allocation11 + $0xa8] sm:$0xf]
    %v2124 = vld [vmem:[#allocation11 + $0xac] sm:$0xf]
    %v2125 = vld [vmem:[#allocation11 + $0xb0] sm:$0xf]
    %v2126 = vld [vmem:[#allocation11 + $0xb4] sm:$0xf]
    %v2127 = vld [vmem:[#allocation11 + $0xb8] sm:$0xf]
    %v2128 = vld [vmem:[#allocation11 + $0xbc] sm:$0xf]
    %v2129 = vld [vmem:[#allocation11 + $0xc0] sm:$0xf]
    %v2130 = vld [vmem:[#allocation11 + $0xc4] sm:$0xf]
    %v2131 = vld [vmem:[#allocation11 + $0xc8] sm:$0xf]
    %v2132 = vld [vmem:[#allocation11 + $0xcc] sm:$0xf]
    %v2133 = vld [vmem:[#allocation11 + $0xd0] sm:$0xf]
    %v2134 = vld [vmem:[#allocation11 + $0xd4] sm:$0xf]
    %v2135 = vld [vmem:[#allocation11 + $0xd8] sm:$0xf]
    %v2136 = vld [vmem:[#allocation11 + $0xdc] sm:$0xf]
    %v2137 = vld [vmem:[#allocation11 + $0xe0] sm:$0xf]
    %v2138 = vld [vmem:[#allocation11 + $0xe4] sm:$0xf]
    %v2139 = vld [vmem:[#allocation11 + $0xe8] sm:$0xf]
    %v2140 = vld [vmem:[#allocation11 + $0xec] sm:$0xf]
    %v2141 = vld [vmem:[#allocation11 + $0xf0] sm:$0xf]
    %v2142 = vld [vmem:[#allocation11 + $0xf4] sm:$0xf]
    %v2143 = vld [vmem:[#allocation11 + $0xf8] sm:$0xf]
    %v2144 = vld [vmem:[#allocation11 + $0xfc] sm:$0xf]
    %v2145 = vld [vmem:[%s11] sm:$0x1]
    %v2147 = vlaneseq
    %v2148 = vshrl.u32 %v2147, 7
    %v2149 = vsub.s32 0, %v2148
    %v2150 = vrot.slane %v2145, %v2149
    %v2216 = vunpack.c.l.b16 %v2081
    %v2217 = vunpack.c.l.b16 %v2082
    %v2218 = vunpack.c.l.b16 %v2083
    %v2219 = vunpack.c.l.b16 %v2084
    %v2220 = vunpack.c.l.b16 %v2085
    %v2221 = vunpack.c.l.b16 %v2086
    %v2222 = vunpack.c.l.b16 %v2087
    %v2223 = vunpack.c.l.b16 %v2088
    %v2224 = vunpack.c.l.b16 %v2089
    %v2225 = vunpack.c.l.b16 %v2090
    %v2226 = vunpack.c.l.b16 %v2091
    %v2227 = vunpack.c.l.b16 %v2092
    %v2228 = vunpack.c.l.b16 %v2093
    %v2229 = vunpack.c.l.b16 %v2094
    %v2230 = vunpack.c.l.b16 %v2095
    %v2231 = vunpack.c.l.b16 %v2096
    %v2232 = vunpack.c.l.b16 %v2097
    %v2233 = vunpack.c.l.b16 %v2098
    %v2234 = vunpack.c.l.b16 %v2099
    %v2235 = vunpack.c.l.b16 %v2100
    %v2236 = vunpack.c.l.b16 %v2101
    %v2237 = vunpack.c.l.b16 %v2102
    %v2238 = vunpack.c.l.b16 %v2103
    %v2239 = vunpack.c.l.b16 %v2104
    %v2240 = vunpack.c.l.b16 %v2105
    %v2241 = vunpack.c.l.b16 %v2106
    %v2242 = vunpack.c.l.b16 %v2107
    %v2243 = vunpack.c.l.b16 %v2108
    %v2244 = vunpack.c.l.b16 %v2109
    %v2245 = vunpack.c.l.b16 %v2110
    %v2246 = vunpack.c.l.b16 %v2111
    %v2247 = vunpack.c.l.b16 %v2112
    %v2248 = vunpack.c.l.b16 %v2113
    %v2249 = vunpack.c.l.b16 %v2114
    %v2250 = vunpack.c.l.b16 %v2115
    %v2251 = vunpack.c.l.b16 %v2116
    %v2252 = vunpack.c.l.b16 %v2117
    %v2253 = vunpack.c.l.b16 %v2118
    %v2254 = vunpack.c.l.b16 %v2119
    %v2255 = vunpack.c.l.b16 %v2120
    %v2256 = vunpack.c.l.b16 %v2121
    %v2257 = vunpack.c.l.b16 %v2122
    %v2258 = vunpack.c.l.b16 %v2123
    %v2259 = vunpack.c.l.b16 %v2124
    %v2260 = vunpack.c.l.b16 %v2125
    %v2261 = vunpack.c.l.b16 %v2126
    %v2262 = vunpack.c.l.b16 %v2127
    %v2263 = vunpack.c.l.b16 %v2128
    %v2264 = vunpack.c.l.b16 %v2129
    %v2265 = vunpack.c.l.b16 %v2130
    %v2266 = vunpack.c.l.b16 %v2131
    %v2267 = vunpack.c.l.b16 %v2132
    %v2268 = vunpack.c.l.b16 %v2133
    %v2269 = vunpack.c.l.b16 %v2134
    %v2270 = vunpack.c.l.b16 %v2135
    %v2271 = vunpack.c.l.b16 %v2136
    %v2272 = vunpack.c.l.b16 %v2137
    %v2273 = vunpack.c.l.b16 %v2138
    %v2274 = vunpack.c.l.b16 %v2139
    %v2275 = vunpack.c.l.b16 %v2140
    %v2276 = vunpack.c.l.b16 %v2141
    %v2277 = vunpack.c.l.b16 %v2142
    %v2278 = vunpack.c.l.b16 %v2143
    %v2279 = vunpack.c.l.b16 %v2144
    %v2280 = vpack.c.b16 %v2217, %v2216
    %v2281 = vpack.c.b16 %v2219, %v2218
    %v2282 = vpack.c.b16 %v2221, %v2220
    %v2283 = vpack.c.b16 %v2223, %v2222
    %v2284 = vpack.c.b16 %v2225, %v2224
    %v2285 = vpack.c.b16 %v2227, %v2226
    %v2286 = vpack.c.b16 %v2229, %v2228
    %v2287 = vpack.c.b16 %v2231, %v2230
    %v2288 = vpack.c.b16 %v2233, %v2232
    %v2289 = vpack.c.b16 %v2235, %v2234
    %v2290 = vpack.c.b16 %v2237, %v2236
    %v2291 = vpack.c.b16 %v2239, %v2238
    %v2292 = vpack.c.b16 %v2241, %v2240
    %v2293 = vpack.c.b16 %v2243, %v2242
    %v2294 = vpack.c.b16 %v2245, %v2244
    %v2295 = vpack.c.b16 %v2247, %v2246
    %v2296 = vpack.c.b16 %v2249, %v2248
    %v2297 = vpack.c.b16 %v2251, %v2250
    %v2298 = vpack.c.b16 %v2253, %v2252
    %v2299 = vpack.c.b16 %v2255, %v2254
    %v2300 = vpack.c.b16 %v2257, %v2256
    %v2301 = vpack.c.b16 %v2259, %v2258
    %v2302 = vpack.c.b16 %v2261, %v2260
    %v2303 = vpack.c.b16 %v2263, %v2262
    %v2304 = vpack.c.b16 %v2265, %v2264
    %v2305 = vpack.c.b16 %v2267, %v2266
    %v2306 = vpack.c.b16 %v2269, %v2268
    %v2307 = vpack.c.b16 %v2271, %v2270
    %v2308 = vpack.c.b16 %v2273, %v2272
    %v2309 = vpack.c.b16 %v2275, %v2274
    %v2310 = vpack.c.b16 %v2277, %v2276
    %v2311 = vpack.c.b16 %v2279, %v2278
    %2344 = vmatprep.subr.bf16.mxu0 0
    %2345 = vmatpush1.bf16.msra.mxu0 %v2280
    %2346 = vmatprep.subr.bf16.mxu0 0
    %2347 = vmatpush1.bf16.msra.mxu0 %v2281
    %2348 = vmatprep.subr.bf16.mxu0 0
    %2349 = vmatpush1.bf16.msra.mxu0 %v2282
    %2350 = vmatprep.subr.bf16.mxu0 0
    %2351 = vmatpush1.bf16.msra.mxu0 %v2283
    %2352 = vmatprep.subr.bf16.mxu0 0
    %2353 = vmatpush1.bf16.msra.mxu0 %v2284
    %2354 = vmatprep.subr.bf16.mxu0 0
    %2355 = vmatpush1.bf16.msra.mxu0 %v2285
    %2356 = vmatprep.subr.bf16.mxu0 0
    %2357 = vmatpush1.bf16.msra.mxu0 %v2286
    %2358 = vmatprep.subr.bf16.mxu0 0
    %2359 = vmatpush1.bf16.msra.mxu0 %v2287
    %2360 = vmatprep.subr.bf16.mxu0 0
    %2361 = vmatpush1.bf16.msra.mxu0 %v2288
    %2362 = vmatprep.subr.bf16.mxu0 0
    %2363 = vmatpush1.bf16.msra.mxu0 %v2289
    %2364 = vmatprep.subr.bf16.mxu0 0
    %2365 = vmatpush1.bf16.msra.mxu0 %v2290
    %2366 = vmatprep.subr.bf16.mxu0 0
    %2367 = vmatpush1.bf16.msra.mxu0 %v2291
    %2368 = vmatprep.subr.bf16.mxu0 0
    %2369 = vmatpush1.bf16.msra.mxu0 %v2292
    %2370 = vmatprep.subr.bf16.mxu0 0
    %2371 = vmatpush1.bf16.msra.mxu0 %v2293
    %2372 = vmatprep.subr.bf16.mxu0 0
    %2373 = vmatpush1.bf16.msra.mxu0 %v2294
    %2374 = vmatprep.subr.bf16.mxu0 0
    %2375 = vmatpush1.bf16.msra.mxu0 %v2295
    %2376 = vmatprep.mubr.bf16.mxu0 %v2074
    %2377 = vmatmul.mubr.bf16.gmra.mrb[0].mxu0 %v2073
    %v2378 = vpop.f32.mrb[0].mxu0
    %v2379 = vadd.f32 %v2150, %v2378
    %v2380 = vpop.f32.mrb[0].mxu0
    %v2381 = vpop.f32.mrb[0].mxu0
    %v2382 = vadd.f32 %v2150, %v2381
    %v2383 = vpop.f32.mrb[0].mxu0
    %2384 = vmatprep.mubr.bf16.mxu0 %v2078
    %2385 = vmatmul.mubr.bf16.gmra.mrb[0].mxu0 %v2077
    %v2386 = vpop.f32.mrb[0].mxu0
    %v2387 = vadd.f32 %v2150, %v2386
    %v2388 = vpop.f32.mrb[0].mxu0
    %v2389 = vpop.f32.mrb[0].mxu0
    %v2390 = vadd.f32 %v2150, %v2389
    %v2391 = vpop.f32.mrb[0].mxu0
    %2392 = vdwg.mxu0
    %2393 = vmatprep.subr.bf16.mxu0 0
    %2394 = vmatpush1.bf16.msra.mxu0 %v2296
    %2395 = vmatprep.subr.bf16.mxu0 0
    %2396 = vmatpush1.bf16.msra.mxu0 %v2297
    %2397 = vmatprep.subr.bf16.mxu0 0
    %2398 = vmatpush1.bf16.msra.mxu0 %v2298
    %2399 = vmatprep.subr.bf16.mxu0 0
    %2400 = vmatpush1.bf16.msra.mxu0 %v2299
    %2401 = vmatprep.subr.bf16.mxu0 0
    %2402 = vmatpush1.bf16.msra.mxu0 %v2300
    %2403 = vmatprep.subr.bf16.mxu0 0
    %2404 = vmatpush1.bf16.msra.mxu0 %v2301
    %2405 = vmatprep.subr.bf16.mxu0 0
    %2406 = vmatpush1.bf16.msra.mxu0 %v2302
    %2407 = vmatprep.subr.bf16.mxu0 0
    %2408 = vmatpush1.bf16.msra.mxu0 %v2303
    %2409 = vmatprep.subr.bf16.mxu0 0
    %2410 = vmatpush1.bf16.msra.mxu0 %v2304
    %2411 = vmatprep.subr.bf16.mxu0 0
    %2412 = vmatpush1.bf16.msra.mxu0 %v2305
    %2413 = vmatprep.subr.bf16.mxu0 0
    %2414 = vmatpush1.bf16.msra.mxu0 %v2306
    %2415 = vmatprep.subr.bf16.mxu0 0
    %2416 = vmatpush1.bf16.msra.mxu0 %v2307
    %2417 = vmatprep.subr.bf16.mxu0 0
    %2418 = vmatpush1.bf16.msra.mxu0 %v2308
    %2419 = vmatprep.subr.bf16.mxu0 0
    %2420 = vmatpush1.bf16.msra.mxu0 %v2309
    %2421 = vmatprep.subr.bf16.mxu0 0
    %2422 = vmatpush1.bf16.msra.mxu0 %v2310
    %2423 = vmatprep.subr.bf16.mxu0 0
    %2424 = vmatpush1.bf16.msra.mxu0 %v2311
    %2425 = vmatprep.mubr.bf16.mxu0 %v2076
    %2426 = vmatmul.mubr.bf16.gmra.mrb[0].mxu0 %v2075
    %v2427 = vpop.f32.mrb[0].mxu0
    %v2428 = vadd.f32 %v2379, %v2427
    %v2429 = vpop.f32.mrb[0].mxu0
    %v2430 = vpop.f32.mrb[0].mxu0
    %v2431 = vadd.f32 %v2382, %v2430
    %v2432 = vpop.f32.mrb[0].mxu0
    %2433 = vmatprep.mubr.bf16.mxu0 %v2080
    %2434 = vmatmul.mubr.bf16.gmra.mrb[0].mxu0 %v2079
    %v2435 = vpop.f32.mrb[0].mxu0
    %v2436 = vadd.f32 %v2387, %v2435
    %v2437 = vpop.f32.mrb[0].mxu0
    %v2438 = vpop.f32.mrb[0].mxu0
    %v2439 = vadd.f32 %v2390, %v2438
    %v2440 = vpop.f32.mrb[0].mxu0
    %2441 = vdwg.mxu0
    %v2442 = vadd.f32 %v1653, %v2428
    %v2443 = vadd.f32 %v1654, %v2431
    %v2444 = vadd.f32 %v1655, %v2436
    %v2445 = vadd.f32 %v1656, %v2439
    %2446 = vst [vmem:[#allocation13] sm:$0xff] %v2442
    %2447 = vst [vmem:[#allocation13 + $0x8] sm:$0xff] %v2443
    %2448 = vst [vmem:[#allocation13 + $0x10] sm:$0xff] %v2444
    %2449 = vst [vmem:[#allocation13 + $0x18] sm:$0xff] %v2445
    // Predicated region
    $region74: #{_block_fwd.1} parent=1 // pred_check
      _
    $region75: #{_block_fwd.1} parent=1 // pred_check_branch
      %2451 = sbr.rel (0) target = $region77
    $region76: #{_block_fwd.1} parent=1 // pred_region
      %s2453 = ssub.s32 512, 512
      %2454 = vsyncadd [#allocation4], %s2453
      %s2455 = sshll.u32 [#allocation13], 4
      %s2456 = int_to_ptr.vmem [resolvable:$true] %s2455
      %2461 = dma.vmem_to_hbm [thread:$0]  %s2456, 512, %s12, [#allocation4], 128, 128, 8
    $region77: #{_block_fwd.1} parent=1 // pred_fallthru
      _
    // Predicated region
    $region78: #{_block_fwd.1} parent=1 // pred_check
      _
    $region79: #{_block_fwd.1} parent=1 // pred_check_branch
      %2463 = sbr.rel (0) target = $region81
    $region80: #{_block_fwd.1} parent=1 // pred_region
      %2464 = dma.done [#allocation4], 512
    $region81: #{_block_fwd.1} parent=1 // pred_fallthru
      _
    %2465 = vsyncpa [#allocation3], 1
    %2466 = vsyncpa [#allocation6], 1
    %2467 = vsyncpa [#allocation9], 1
    %2468 = vsyncpa [#allocation12], 1
    %2469 = vsyncpa [#allocation4], 1

</llo_original>
